<compile_context>
chip_gen: v7x
topology: tpu7x:2x2x1
jax: 0.10.0
libtpu: 0.0.40
codegen_flags: <defaults>
</compile_context>

<pallas_src>
import functools

import jax
import jax.numpy as jnp
from jax.experimental import pallas as pl
from jax.experimental.pallas import tpu as pltpu

EPS_GEN = 1e-7
EPS_LN = 1e-5

ATOM_VOCAB = [119, 4, 12, 12, 10, 6, 6, 2, 2]   # OGB atom feature dims
BOND_VOCAB = [5, 6, 2]                          # OGB bond feature dims

# Row layout of the packed per-layer vector tensor (L, 9, D).
_GCN_B, _NORM_G, _NORM_B = 0, 1, 2
_VN_B1, _VN_G1, _VN_BE1 = 3, 4, 5
_VN_B2, _VN_G2, _VN_BE2 = 6, 7, 8


def _ln(x, gamma, beta):
    mu = jnp.mean(x, axis=-1, keepdims=True)
    var = jnp.mean((x - mu) ** 2, axis=-1, keepdims=True)
    return (x - mu) * jax.lax.rsqrt(var + EPS_LN) * gamma + beta


def _bf16(x):
    return x.astype(jnp.bfloat16)


# ----------------------------- fused kernel ---------------------------------

def _kernel(src_ref, dst_ref, batr_ref, batc_ref, h0_ref, eemb_ref,
            gcn_w_ref, ffn_w_ref, ffn_b_ref, vec_ref, vn_w_ref,
            out_ref,
            h_sc, vn_sc, xin_sc, gat_sc, sct_sc, pool_sc, bcast_sc):
    l = pl.program_id(0)
    N, D = h0_ref.shape
    E = eemb_ref.shape[0]
    G = vn_sc.shape[0]

    # ---- layer 0: init VMEM-resident state + layer-invariant one-hot masks.
    @pl.when(l == 0)
    def _():
        h_sc[...] = jnp.zeros_like(h_sc)      # zero residual -> no-op at l == 0
        xin_sc[...] = h0_ref[...]             # vn embedding is zero-init
        vn_sc[...] = jnp.zeros_like(vn_sc)
        # One-hot masks are exact in bf16; built once, reused for all L layers.
        # NOTE: src/dst must lie in [0, N) and batch ids in [0, G); padded
        # edges/nodes must be mapped out of range by the caller.
        gat_sc[...] = (src_ref[...] ==
                       jax.lax.broadcasted_iota(jnp.int32, (E, N), 1)
                       ).astype(jnp.bfloat16)
        sct_sc[...] = (jax.lax.broadcasted_iota(jnp.int32, (N, E), 0) ==
                       dst_ref[...]).astype(jnp.bfloat16)
        pool_sc[...] = (batr_ref[...] ==
                        jax.lax.broadcasted_iota(jnp.int32, (G, N), 0)
                        ).astype(jnp.bfloat16)
        bcast_sc[...] = (batc_ref[...] ==
                         jax.lax.broadcasted_iota(jnp.int32, (N, G), 1)
                         ).astype(jnp.bfloat16)

    # ---- layers >= 1: LayerNorm -> ReLU, virtual-node MLP, vn[batch] add.
    @pl.when(l > 0)
    def _():
        norm_g = vec_ref[_NORM_G:_NORM_G + 1, :]
        norm_b = vec_ref[_NORM_B:_NORM_B + 1, :]
        h2 = jnp.maximum(_ln(h_sc[...], norm_g, norm_b), 0.0)        # (N, D) f32

        # global_add_pool on the MXU: (G, N) @ (N, D).
        pooled = jnp.dot(pool_sc[...], _bf16(h2),
                         preferred_element_type=jnp.float32)
        vn_tmp = pooled + vn_sc[...]                                 # (G, D)

        # MLP([D, D, D], norm='layer'): Lin -> LN -> ReLU -> Lin -> LN -> ReLU.
        z = jnp.dot(_bf16(vn_tmp), vn_w_ref[0],
                    preferred_element_type=jnp.float32) + vec_ref[_VN_B1:_VN_B1 + 1, :]
        z = jnp.maximum(_ln(z, vec_ref[_VN_G1:_VN_G1 + 1, :],
                            vec_ref[_VN_BE1:_VN_BE1 + 1, :]), 0.0)
        z = jnp.dot(_bf16(z), vn_w_ref[1],
                    preferred_element_type=jnp.float32) + vec_ref[_VN_B2:_VN_B2 + 1, :]
        vn_new = jnp.maximum(_ln(z, vec_ref[_VN_G2:_VN_G2 + 1, :],
                                 vec_ref[_VN_BE2:_VN_BE2 + 1, :]), 0.0)
        vn_sc[...] = vn_new
        # TODO(synk): F.dropout on the virtual-node MLP output omitted (eval mode).

        # h2 + vn_new[batch] on the MXU: (N, G) @ (G, D).
        vn_b = jnp.dot(bcast_sc[...], _bf16(vn_new),
                       preferred_element_type=jnp.float32)
        xin_sc[...] = h2 + vn_b

    # ---- GENConv(aggr='add', mlp_layers=1) + residual ----------------------
    xin = xin_sc[...]                                                 # (N, D) f32
    x_src = jnp.dot(gat_sc[...], _bf16(xin),
                    preferred_element_type=jnp.float32)               # (E, D)
    msg = jnp.maximum(x_src + eemb_ref[...], 0.0) + EPS_GEN           # (E, D) f32
    m = jnp.dot(sct_sc[...], _bf16(msg),
                preferred_element_type=jnp.float32)                   # (N, D)
    conv = jnp.dot(_bf16(xin + m), gcn_w_ref[...],
                   preferred_element_type=jnp.float32) + vec_ref[_GCN_B:_GCN_B + 1, :]
    h_new = conv + h_sc[...]              # h_sc == 0 at l == 0 -> no residual
    h_sc[...] = h_new

    # ---- per-layer FFN epilogue: write this layer's (N, dims) output slab.
    y = jnp.dot(_bf16(h_new), ffn_w_ref[...],
                preferred_element_type=jnp.float32) + ffn_b_ref[...]  # (N, dims)
    out_ref[l] = y            # (L, N, dims) block stays VMEM-resident; one
                              # HBM writeback after the last grid step.


# ----------------------------- parameters -----------------------------------

def _glorot(key, shape):
    fan_in, fan_out = shape[-2], shape[-1]
    lim = (6.0 / (fan_in + fan_out)) ** 0.5
    return jax.random.uniform(key, shape, jnp.float32, -lim, lim)


def init_params(key, num_gc_layers, dims, power):
    D = dims * power
    L = num_gc_layers
    keys = iter(jax.random.split(key, 64 + 16 * L))
    nxt = lambda: next(keys)

    p = {}
    p['atom_emb'] = [jax.random.normal(nxt(), (v, D), jnp.float32) * 0.1 for v in ATOM_VOCAB]
    p['bond_emb'] = [jax.random.normal(nxt(), (v, D), jnp.float32) * 0.1 for v in BOND_VOCAB]

    # MXU-facing weights stored bf16 (halves the per-step weight DMA bytes).
    p['gcn_w'] = jnp.stack([_glorot(nxt(), (D, D)) for _ in range(L)]).astype(jnp.bfloat16)
    p['ffn_w'] = jnp.stack([_glorot(nxt(), (D, dims)) for _ in range(L)]).astype(jnp.bfloat16)
    p['ffn_b'] = jax.random.normal(nxt(), (L, 1, dims), jnp.float32) * 0.01

    # Packed per-layer (1, D) vectors -> one (L, 9, D) DMA per grid step.
    # Row l holds the params of norm / vn-MLP index (l-1); row 0 of those is a
    # never-read dummy (guarded by pl.when(l > 0)).  gcn bias is used by all.
    vecs = jnp.zeros((L, 9, D), jnp.float32)
    vecs = vecs.at[:, _GCN_B].set(jax.random.normal(nxt(), (L, D), jnp.float32) * 0.01)
    vecs = vecs.at[:, _NORM_G].set(1.0)
    vecs = vecs.at[:, _VN_G1].set(1.0)
    vecs = vecs.at[:, _VN_G2].set(1.0)
    p['vecs'] = vecs

    # Virtual-node MLP weights: row j holds layer (j+1)'s two matrices; no
    # dummy layer-0 row is stored (clamped index_map fetches row 0 at l == 0
    # and layer 1 then reuses that same block without a new DMA).
    n_vn = max(L - 1, 1)
    vn_w = jnp.zeros((n_vn, 2, D, D), jnp.float32)
    for j in range(L - 1):
        vn_w = vn_w.at[j, 0].set(_glorot(nxt(), (D, D)))
        vn_w = vn_w.at[j, 1].set(_glorot(nxt(), (D, D)))
    p['vn_w'] = vn_w.astype(jnp.bfloat16)
    return p


# ----------------------------- forward ---------------------------------------

def deeper_gcn_forward(params, x_atoms, edge_attr, edge_index, batch,
                       num_graphs, num_gc_layers, powers, dims):
    D = params['atom_emb'][0].shape[1]
    N = x_atoms.shape[0]
    E = edge_attr.shape[0]
    L = num_gc_layers
    G = num_graphs

    # Encoders: embedding-table gathers (plain-JAX glue; data-dependent gather).
    h0 = jnp.zeros((N, D), jnp.float32)
    for i, tab in enumerate(params['atom_emb']):
        h0 = h0 + tab[x_atoms[:, i]]
    h_init = h0
    # Virtual-node Embedding(1, D) is zero-initialised -> h + vn[batch] is a
    # no-op; the kernel initialises its vn state to zeros accordingly.

    eemb = jnp.zeros((E, D), jnp.float32)
    for i, tab in enumerate(params['bond_emb']):
        eemb = eemb + tab[edge_attr[:, i]]

    src = edge_index[0].astype(jnp.int32).reshape(E, 1)
    dst = edge_index[1].astype(jnp.int32).reshape(1, E)
    bat_row = batch.astype(jnp.int32).reshape(1, N)
    bat_col = batch.astype(jnp.int32).reshape(N, 1)

    const2 = lambda shape: pl.BlockSpec(shape, lambda l: (0, 0))
    layer3 = lambda s1, s2: pl.BlockSpec((None, s1, s2), lambda l: (l, 0, 0))

    in_specs = [
        const2((E, 1)), const2((1, E)), const2((1, N)), const2((N, 1)),
        const2((N, D)), const2((E, D)),
        layer3(D, D),                                   # gcn_w     (bf16)
        layer3(D, dims),                                # ffn_w     (bf16)
        layer3(1, dims),                                # ffn_b
        layer3(9, D),                                   # packed per-layer vectors
        pl.BlockSpec((None, 2, D, D),                   # vn MLP weights (bf16),
                     lambda l: (jnp.maximum(l, 1) - 1, 0, 0, 0)),   # clamped map
    ]

    out = pl.pallas_call(
        _kernel,
        out_shape=jax.ShapeDtypeStruct((L, N, dims), jnp.float32),
        grid=(L,),
        in_specs=in_specs,
        out_specs=pl.BlockSpec((L, N, dims), lambda l: (0, 0, 0)),
        scratch_shapes=[
            pltpu.VMEM((N, D), jnp.float32),        # h (carried across layers)
            pltpu.VMEM((G, D), jnp.float32),        # virtual-node state
            pltpu.VMEM((N, D), jnp.float32),        # GENConv input
            pltpu.VMEM((E, N), jnp.bfloat16),       # gather one-hot  (src)
            pltpu.VMEM((N, E), jnp.bfloat16),       # scatter one-hot (dst)
            pltpu.VMEM((G, N), jnp.bfloat16),       # pooling one-hot (batch)
            pltpu.VMEM((N, G), jnp.bfloat16),       # vn-broadcast one-hot
        ],
        compiler_params=pltpu.CompilerParams(
            dimension_semantics=("arbitrary",),     # layers are sequential
            vmem_limit_bytes=32 * 1024 * 1024,      # explicit budget, safe on v5e/v6e/v7x
        ),
        # TODO(synk): for v7x, shard independent graph mini-batches across the
        # two TensorCores (outer "parallel" grid axis); at real batch sizes,
        # tile the edge dimension or switch to a DMA gather so the (E, N)
        # masks / resident edge embeddings stay within the 64 MiB VMEM.
    )(src, dst, bat_row, bat_col, h0, eemb,
      params['gcn_w'], params['ffn_w'], params['ffn_b'],
      params['vecs'], params['vn_w'])

    # powers == range(power) -> contiguous layers; kept general.
    h_graph = jnp.concatenate([out[p] for p in powers], axis=-1)
    return h_graph, h_init


# ----------------------------- demo ------------------------------------------

if __name__ == "__main__":
    num_gc_layers = 4
    power = 4
    dims = 32
    D = dims * power               # 128 (lane-aligned)

    N, E, G = 16, 32, 2            # nodes, edges, graphs in the batch

    key = jax.random.PRNGKey(0)
    k_x, k_e, k_ei, k_p = jax.random.split(key, 4)

    x_atoms = jax.random.randint(k_x, (N, len(ATOM_VOCAB)), 0, jnp.array(ATOM_VOCAB))
    edge_attr = jax.random.randint(k_e, (E, len(BOND_VOCAB)), 0, jnp.array(BOND_VOCAB))
    edge_index = jax.random.randint(k_ei, (2, E), 0, N)
    batch = jnp.concatenate([jnp.zeros(N // 2, jnp.int32), jnp.ones(N - N // 2, jnp.int32)])

    params = init_params(k_p, num_gc_layers, dims, power)

    fwd = jax.jit(functools.partial(
        deeper_gcn_forward,
        num_graphs=G, num_gc_layers=num_gc_layers,
        powers=list(range(power)), dims=dims))

    h_graph, h_init = fwd(params, x_atoms, edge_attr, edge_index, batch)
    jax.block_until_ready((h_graph, h_init))

    assert h_graph.shape == (N, dims * power), h_graph.shape
    assert h_init.shape == (N, dims * power), h_init.shape
    assert jnp.all(jnp.isfinite(h_graph)) and jnp.all(jnp.isfinite(h_init))
    print("KERNEL_OK")
</pallas_src>

<mosaic_0001>
module attributes {stable_mosaic.version = 11 : i64} {
  func.func @_kernel(%arg0: i32, %arg1: memref<32x1xi32, #tpu.memory_space<vmem>>, %arg2: memref<1x32xi32, #tpu.memory_space<vmem>>, %arg3: memref<1x16xi32, #tpu.memory_space<vmem>>, %arg4: memref<16x1xi32, #tpu.memory_space<vmem>>, %arg5: memref<16x128xf32, #tpu.memory_space<vmem>>, %arg6: memref<32x128xf32, #tpu.memory_space<vmem>>, %arg7: memref<1x128x128xbf16, #tpu.memory_space<vmem>>, %arg8: memref<1x128x32xbf16, #tpu.memory_space<vmem>>, %arg9: memref<1x1x32xf32, #tpu.memory_space<vmem>>, %arg10: memref<1x9x128xf32, #tpu.memory_space<vmem>>, %arg11: memref<1x2x128x128xbf16, #tpu.memory_space<vmem>>, %arg12: memref<4x16x32xf32, #tpu.memory_space<vmem>>, %arg13: memref<16x128xf32, #tpu.memory_space<vmem>>, %arg14: memref<2x128xf32, #tpu.memory_space<vmem>>, %arg15: memref<16x128xf32, #tpu.memory_space<vmem>>, %arg16: memref<32x16xbf16, #tpu.memory_space<vmem>>, %arg17: memref<16x32xbf16, #tpu.memory_space<vmem>>, %arg18: memref<2x16xbf16, #tpu.memory_space<vmem>>, %arg19: memref<16x2xbf16, #tpu.memory_space<vmem>>) attributes {dimension_semantics = [#tpu.dimension_semantics<arbitrary>], iteration_bounds = array<i64: 4>, scalar_prefetch = 0 : i64, scratch_operands = 7 : i64, tpu.core_type = #tpu.core_type<tc>, window_params = [{pipeline_mode = #tpu.pipeline_mode<synchronous>, transform_indices = @transform_0, window_bounds = array<i64: 32, 1>}, {pipeline_mode = #tpu.pipeline_mode<synchronous>, transform_indices = @transform_1, window_bounds = array<i64: 1, 32>}, {pipeline_mode = #tpu.pipeline_mode<synchronous>, transform_indices = @transform_2, window_bounds = array<i64: 1, 16>}, {pipeline_mode = #tpu.pipeline_mode<synchronous>, transform_indices = @transform_3, window_bounds = array<i64: 16, 1>}, {pipeline_mode = #tpu.pipeline_mode<synchronous>, transform_indices = @transform_4, window_bounds = array<i64: 16, 128>}, {pipeline_mode = #tpu.pipeline_mode<synchronous>, transform_indices = @transform_5, window_bounds = array<i64: 32, 128>}, {transform_indices = @transform_6, window_bounds = array<i64: 1, 128, 128>}, {transform_indices = @transform_7, window_bounds = array<i64: 1, 128, 32>}, {transform_indices = @transform_8, window_bounds = array<i64: 1, 1, 32>}, {transform_indices = @transform_9, window_bounds = array<i64: 1, 9, 128>}, {transform_indices = @transform_10, window_bounds = array<i64: 1, 2, 128, 128>}, {pipeline_mode = #tpu.pipeline_mode<synchronous>, transform_indices = @transform_11, window_bounds = array<i64: 4, 16, 32>}]} {
    %c0_i32 = arith.constant 0 : i32
    %0 = arith.cmpi eq, %arg0, %c0_i32 : i32
    %1 = arith.extui %0 : i1 to i32
    %c0_i32_0 = arith.constant 0 : i32
    %2 = arith.cmpi ne, %1, %c0_i32_0 : i32
    scf.if %2 {
      %cst_33 = arith.constant 0.000000e+00 : f32
      %43 = vector.broadcast %cst_33 : f32 to vector<16x128xf32>
      %c0_34 = arith.constant 0 : index
      %c0_35 = arith.constant 0 : index
      %44 = vector.load %arg13[%c0_34, %c0_35] : memref<16x128xf32, #tpu.memory_space<vmem>>, vector<16x128xf32>
      tpu.vector_store %arg13[%c0_34, %c0_35], %43 {strides = array<i32>} : memref<16x128xf32, #tpu.memory_space<vmem>>, vector<16x128xf32>,
      %c0_36 = arith.constant 0 : index
      %c0_37 = arith.constant 0 : index
      %45 = vector.load %arg5[%c0_36, %c0_37] : memref<16x128xf32, #tpu.memory_space<vmem>>, vector<16x128xf32>
      %c0_38 = arith.constant 0 : index
      %c0_39 = arith.constant 0 : index
      %46 = vector.load %arg15[%c0_38, %c0_39] : memref<16x128xf32, #tpu.memory_space<vmem>>, vector<16x128xf32>
      tpu.vector_store %arg15[%c0_38, %c0_39], %45 {strides = array<i32>} : memref<16x128xf32, #tpu.memory_space<vmem>>, vector<16x128xf32>,
      %cst_40 = arith.constant 0.000000e+00 : f32
      %47 = vector.broadcast %cst_40 : f32 to vector<2x128xf32>
      %c0_41 = arith.constant 0 : index
      %c0_42 = arith.constant 0 : index
      %48 = vector.load %arg14[%c0_41, %c0_42] : memref<2x128xf32, #tpu.memory_space<vmem>>, vector<2x128xf32>
      tpu.vector_store %arg14[%c0_41, %c0_42], %47 {strides = array<i32>} : memref<2x128xf32, #tpu.memory_space<vmem>>, vector<2x128xf32>,
      %c0_43 = arith.constant 0 : index
      %c0_44 = arith.constant 0 : index
      %49 = vector.load %arg1[%c0_43, %c0_44] : memref<32x1xi32, #tpu.memory_space<vmem>>, vector<32x1xi32>
      %50 = tpu.iota {dimensions = array<i32: 1>} : vector<32x16xi32>
      %51 = vector.broadcast %49 : vector<32x1xi32> to vector<32x16xi32>
      %52 = arith.cmpi eq, %51, %50 : vector<32x16xi32>
      %53 = arith.extui %52 : vector<32x16xi1> to vector<32x16xi32>
      %54 = arith.sitofp %53 : vector<32x16xi32> to vector<32x16xf32>
      %55 = arith.truncf %54 : vector<32x16xf32> to vector<32x16xbf16>
      %c0_45 = arith.constant 0 : index
      %c0_46 = arith.constant 0 : index
      %56 = vector.load %arg16[%c0_45, %c0_46] : memref<32x16xbf16, #tpu.memory_space<vmem>>, vector<32x16xbf16>
      tpu.vector_store %arg16[%c0_45, %c0_46], %55 {strides = array<i32>} : memref<32x16xbf16, #tpu.memory_space<vmem>>, vector<32x16xbf16>,
      %57 = tpu.iota {dimensions = array<i32: 0>} : vector<16x32xi32>
      %c0_47 = arith.constant 0 : index
      %c0_48 = arith.constant 0 : index
      %58 = vector.load %arg2[%c0_47, %c0_48] : memref<1x32xi32, #tpu.memory_space<vmem>>, vector<1x32xi32>
      %59 = vector.broadcast %58 : vector<1x32xi32> to vector<16x32xi32>
      %60 = arith.cmpi eq, %57, %59 : vector<16x32xi32>
      %61 = arith.extui %60 : vector<16x32xi1> to vector<16x32xi32>
      %62 = arith.sitofp %61 : vector<16x32xi32> to vector<16x32xf32>
      %63 = arith.truncf %62 : vector<16x32xf32> to vector<16x32xbf16>
      %c0_49 = arith.constant 0 : index
      %c0_50 = arith.constant 0 : index
      %64 = vector.load %arg17[%c0_49, %c0_50] : memref<16x32xbf16, #tpu.memory_space<vmem>>, vector<16x32xbf16>
      tpu.vector_store %arg17[%c0_49, %c0_50], %63 {strides = array<i32>} : memref<16x32xbf16, #tpu.memory_space<vmem>>, vector<16x32xbf16>,
      %c0_51 = arith.constant 0 : index
      %c0_52 = arith.constant 0 : index
      %65 = vector.load %arg3[%c0_51, %c0_52] : memref<1x16xi32, #tpu.memory_space<vmem>>, vector<1x16xi32>
      %66 = tpu.iota {dimensions = array<i32: 0>} : vector<2x16xi32>
      %67 = vector.broadcast %65 : vector<1x16xi32> to vector<2x16xi32>
      %68 = arith.cmpi eq, %67, %66 : vector<2x16xi32>
      %69 = arith.extui %68 : vector<2x16xi1> to vector<2x16xi32>
      %70 = arith.sitofp %69 : vector<2x16xi32> to vector<2x16xf32>
      %71 = arith.truncf %70 : vector<2x16xf32> to vector<2x16xbf16>
      %c0_53 = arith.constant 0 : index
      %c0_54 = arith.constant 0 : index
      %72 = vector.load %arg18[%c0_53, %c0_54] : memref<2x16xbf16, #tpu.memory_space<vmem>>, vector<2x16xbf16>
      tpu.vector_store %arg18[%c0_53, %c0_54], %71 {strides = array<i32>} : memref<2x16xbf16, #tpu.memory_space<vmem>>, vector<2x16xbf16>,
      %c0_55 = arith.constant 0 : index
      %c0_56 = arith.constant 0 : index
      %73 = vector.load %arg4[%c0_55, %c0_56] : memref<16x1xi32, #tpu.memory_space<vmem>>, vector<16x1xi32>
      %74 = tpu.iota {dimensions = array<i32: 1>} : vector<16x2xi32>
      %75 = vector.broadcast %73 : vector<16x1xi32> to vector<16x2xi32>
      %76 = arith.cmpi eq, %75, %74 : vector<16x2xi32>
      %77 = arith.extui %76 : vector<16x2xi1> to vector<16x2xi32>
      %78 = arith.sitofp %77 : vector<16x2xi32> to vector<16x2xf32>
      %79 = arith.truncf %78 : vector<16x2xf32> to vector<16x2xbf16>
      %c0_57 = arith.constant 0 : index
      %c0_58 = arith.constant 0 : index
      %80 = vector.load %arg19[%c0_57, %c0_58] : memref<16x2xbf16, #tpu.memory_space<vmem>>, vector<16x2xbf16>
      tpu.vector_store %arg19[%c0_57, %c0_58], %79 {strides = array<i32>} : memref<16x2xbf16, #tpu.memory_space<vmem>>, vector<16x2xbf16>,
    } else {
    }
    %c0_i32_1 = arith.constant 0 : i32
    %3 = arith.cmpi sgt, %arg0, %c0_i32_1 : i32
    %4 = arith.extui %3 : i1 to i32
    %c0_i32_2 = arith.constant 0 : i32
    %5 = arith.cmpi ne, %4, %c0_i32_2 : i32
    scf.if %5 {
      %c0_33 = arith.constant 0 : index
      %c1 = arith.constant 1 : index
      %c0_34 = arith.constant 0 : index
      %43 = vector.load %arg10[%c0_33, %c1, %c0_34] : memref<1x9x128xf32, #tpu.memory_space<vmem>>, vector<1x1x128xf32>
      %44 = vector.shape_cast %43 : vector<1x1x128xf32> to vector<1x128xf32>
      %c0_35 = arith.constant 0 : index
      %c2 = arith.constant 2 : index
      %c0_36 = arith.constant 0 : index
      %45 = vector.load %arg10[%c0_35, %c2, %c0_36] : memref<1x9x128xf32, #tpu.memory_space<vmem>>, vector<1x1x128xf32>
      %46 = vector.shape_cast %45 : vector<1x1x128xf32> to vector<1x128xf32>
      %c0_37 = arith.constant 0 : index
      %c0_38 = arith.constant 0 : index
      %47 = vector.load %arg13[%c0_37, %c0_38] : memref<16x128xf32, #tpu.memory_space<vmem>>, vector<16x128xf32>
      %cst_39 = arith.constant dense<0.000000e+00> : vector<16xf32>
      %48 = vector.multi_reduction <add>, %47, %cst_39 [1] : vector<16x128xf32> to vector<16xf32>
      %49 = vector.shape_cast %48 : vector<16xf32> to vector<16x1xf32>
      %cst_40 = arith.constant 1.280000e+02 : f32
      %50 = vector.broadcast %cst_40 : f32 to vector<16x1xf32>
      %51 = arith.divf %49, %50 : vector<16x1xf32>
      %52 = vector.broadcast %51 : vector<16x1xf32> to vector<16x128xf32>
      %53 = arith.subf %47, %52 : vector<16x128xf32>
      %54 = arith.mulf %53, %53 : vector<16x128xf32>
      %cst_41 = arith.constant dense<0.000000e+00> : vector<16xf32>
      %55 = vector.multi_reduction <add>, %54, %cst_41 [1] : vector<16x128xf32> to vector<16xf32>
      %56 = vector.shape_cast %55 : vector<16xf32> to vector<16x1xf32>
      %cst_42 = arith.constant 1.280000e+02 : f32
      %57 = vector.broadcast %cst_42 : f32 to vector<16x1xf32>
      %58 = arith.divf %56, %57 : vector<16x1xf32>
      %59 = vector.broadcast %51 : vector<16x1xf32> to vector<16x128xf32>
      %60 = arith.subf %47, %59 : vector<16x128xf32>
      %cst_43 = arith.constant 9.99999974E-6 : f32
      %61 = vector.broadcast %cst_43 : f32 to vector<16x1xf32>
      %62 = arith.addf %58, %61 : vector<16x1xf32>
      %63 = math.rsqrt %62 : vector<16x1xf32>
      %64 = vector.broadcast %63 : vector<16x1xf32> to vector<16x128xf32>
      %65 = arith.mulf %60, %64 : vector<16x128xf32>
      %66 = vector.broadcast %44 : vector<1x128xf32> to vector<16x128xf32>
      %67 = arith.mulf %65, %66 : vector<16x128xf32>
      %68 = vector.broadcast %46 : vector<1x128xf32> to vector<16x128xf32>
      %69 = arith.addf %67, %68 : vector<16x128xf32>
      %cst_44 = arith.constant 0.000000e+00 : f32
      %70 = vector.broadcast %cst_44 : f32 to vector<16x128xf32>
      %71 = arith.maximumf %69, %70 : vector<16x128xf32>
      %c0_45 = arith.constant 0 : index
      %c0_46 = arith.constant 0 : index
      %72 = vector.load %arg18[%c0_45, %c0_46] : memref<2x16xbf16, #tpu.memory_space<vmem>>, vector<2x16xbf16>
      %73 = arith.truncf %71 : vector<16x128xf32> to vector<16x128xbf16>
      %cst_47 = arith.constant dense<0.000000e+00> : vector<2x128xf32>
      %74 = tpu.matmul %72, %73, %cst_47 {dimension_numbers = #tpu.dot_dimension_numbers<[1], [0], [0], [1], [0, 0, 1, 1], [], []>} : vector<2x16xbf16>, vector<16x128xbf16>, vector<2x128xf32> -> vector<2x128xf32>
      %c0_48 = arith.constant 0 : index
      %c0_49 = arith.constant 0 : index
      %75 = vector.load %arg14[%c0_48, %c0_49] : memref<2x128xf32, #tpu.memory_space<vmem>>, vector<2x128xf32>
      %76 = arith.addf %74, %75 : vector<2x128xf32>
      %77 = arith.truncf %76 : vector<2x128xf32> to vector<2x128xbf16>
      %c0_50 = arith.constant 0 : index
      %c0_51 = arith.constant 0 : index
      %c0_52 = arith.constant 0 : index
      %c0_53 = arith.constant 0 : index
      %78 = vector.load %arg11[%c0_50, %c0_51, %c0_52, %c0_53] : memref<1x2x128x128xbf16, #tpu.memory_space<vmem>>, vector<1x1x128x128xbf16>
      %79 = vector.shape_cast %78 : vector<1x1x128x128xbf16> to vector<128x128xbf16>
      %cst_54 = arith.constant dense<0.000000e+00> : vector<2x128xf32>
      %80 = tpu.matmul %77, %79, %cst_54 {dimension_numbers = #tpu.dot_dimension_numbers<[1], [0], [0], [1], [0, 0, 1, 1], [], []>} : vector<2x128xbf16>, vector<128x128xbf16>, vector<2x128xf32> -> vector<2x128xf32>
      %c0_55 = arith.constant 0 : index
      %c3 = arith.constant 3 : index
      %c0_56 = arith.constant 0 : index
      %81 = vector.load %arg10[%c0_55, %c3, %c0_56] : memref<1x9x128xf32, #tpu.memory_space<vmem>>, vector<1x1x128xf32>
      %82 = vector.shape_cast %81 : vector<1x1x128xf32> to vector<1x128xf32>
      %83 = vector.broadcast %82 : vector<1x128xf32> to vector<2x128xf32>
      %84 = arith.addf %80, %83 : vector<2x128xf32>
      %c0_57 = arith.constant 0 : index
      %c4 = arith.constant 4 : index
      %c0_58 = arith.constant 0 : index
      %85 = vector.load %arg10[%c0_57, %c4, %c0_58] : memref<1x9x128xf32, #tpu.memory_space<vmem>>, vector<1x1x128xf32>
      %86 = vector.shape_cast %85 : vector<1x1x128xf32> to vector<1x128xf32>
      %c0_59 = arith.constant 0 : index
      %c5 = arith.constant 5 : index
      %c0_60 = arith.constant 0 : index
      %87 = vector.load %arg10[%c0_59, %c5, %c0_60] : memref<1x9x128xf32, #tpu.memory_space<vmem>>, vector<1x1x128xf32>
      %88 = vector.shape_cast %87 : vector<1x1x128xf32> to vector<1x128xf32>
      %cst_61 = arith.constant dense<0.000000e+00> : vector<2xf32>
      %89 = vector.multi_reduction <add>, %84, %cst_61 [1] : vector<2x128xf32> to vector<2xf32>
      %90 = vector.shape_cast %89 : vector<2xf32> to vector<2x1xf32>
      %cst_62 = arith.constant 1.280000e+02 : f32
      %91 = vector.broadcast %cst_62 : f32 to vector<2x1xf32>
      %92 = arith.divf %90, %91 : vector<2x1xf32>
      %93 = vector.broadcast %92 : vector<2x1xf32> to vector<2x128xf32>
      %94 = arith.subf %84, %93 : vector<2x128xf32>
      %95 = arith.mulf %94, %94 : vector<2x128xf32>
      %cst_63 = arith.constant dense<0.000000e+00> : vector<2xf32>
      %96 = vector.multi_reduction <add>, %95, %cst_63 [1] : vector<2x128xf32> to vector<2xf32>
      %97 = vector.shape_cast %96 : vector<2xf32> to vector<2x1xf32>
      %cst_64 = arith.constant 1.280000e+02 : f32
      %98 = vector.broadcast %cst_64 : f32 to vector<2x1xf32>
      %99 = arith.divf %97, %98 : vector<2x1xf32>
      %100 = vector.broadcast %92 : vector<2x1xf32> to vector<2x128xf32>
      %101 = arith.subf %84, %100 : vector<2x128xf32>
      %cst_65 = arith.constant 9.99999974E-6 : f32
      %102 = vector.broadcast %cst_65 : f32 to vector<2x1xf32>
      %103 = arith.addf %99, %102 : vector<2x1xf32>
      %104 = math.rsqrt %103 : vector<2x1xf32>
      %105 = vector.broadcast %104 : vector<2x1xf32> to vector<2x128xf32>
      %106 = arith.mulf %101, %105 : vector<2x128xf32>
      %107 = vector.broadcast %86 : vector<1x128xf32> to vector<2x128xf32>
      %108 = arith.mulf %106, %107 : vector<2x128xf32>
      %109 = vector.broadcast %88 : vector<1x128xf32> to vector<2x128xf32>
      %110 = arith.addf %108, %109 : vector<2x128xf32>
      %cst_66 = arith.constant 0.000000e+00 : f32
      %111 = vector.broadcast %cst_66 : f32 to vector<2x128xf32>
      %112 = arith.maximumf %110, %111 : vector<2x128xf32>
      %113 = arith.truncf %112 : vector<2x128xf32> to vector<2x128xbf16>
      %c0_67 = arith.constant 0 : index
      %c1_68 = arith.constant 1 : index
      %c0_69 = arith.constant 0 : index
      %c0_70 = arith.constant 0 : index
      %114 = vector.load %arg11[%c0_67, %c1_68, %c0_69, %c0_70] : memref<1x2x128x128xbf16, #tpu.memory_space<vmem>>, vector<1x1x128x128xbf16>
      %115 = vector.shape_cast %114 : vector<1x1x128x128xbf16> to vector<128x128xbf16>
      %cst_71 = arith.constant dense<0.000000e+00> : vector<2x128xf32>
      %116 = tpu.matmul %113, %115, %cst_71 {dimension_numbers = #tpu.dot_dimension_numbers<[1], [0], [0], [1], [0, 0, 1, 1], [], []>} : vector<2x128xbf16>, vector<128x128xbf16>, vector<2x128xf32> -> vector<2x128xf32>
      %c0_72 = arith.constant 0 : index
      %c6 = arith.constant 6 : index
      %c0_73 = arith.constant 0 : index
      %117 = vector.load %arg10[%c0_72, %c6, %c0_73] : memref<1x9x128xf32, #tpu.memory_space<vmem>>, vector<1x1x128xf32>
      %118 = vector.shape_cast %117 : vector<1x1x128xf32> to vector<1x128xf32>
      %119 = vector.broadcast %118 : vector<1x128xf32> to vector<2x128xf32>
      %120 = arith.addf %116, %119 : vector<2x128xf32>
      %c0_74 = arith.constant 0 : index
      %c7 = arith.constant 7 : index
      %c0_75 = arith.constant 0 : index
      %121 = vector.load %arg10[%c0_74, %c7, %c0_75] : memref<1x9x128xf32, #tpu.memory_space<vmem>>, vector<1x1x128xf32>
      %122 = vector.shape_cast %121 : vector<1x1x128xf32> to vector<1x128xf32>
      %c0_76 = arith.constant 0 : index
      %c8 = arith.constant 8 : index
      %c0_77 = arith.constant 0 : index
      %123 = vector.load %arg10[%c0_76, %c8, %c0_77] : memref<1x9x128xf32, #tpu.memory_space<vmem>>, vector<1x1x128xf32>
      %124 = vector.shape_cast %123 : vector<1x1x128xf32> to vector<1x128xf32>
      %cst_78 = arith.constant dense<0.000000e+00> : vector<2xf32>
      %125 = vector.multi_reduction <add>, %120, %cst_78 [1] : vector<2x128xf32> to vector<2xf32>
      %126 = vector.shape_cast %125 : vector<2xf32> to vector<2x1xf32>
      %cst_79 = arith.constant 1.280000e+02 : f32
      %127 = vector.broadcast %cst_79 : f32 to vector<2x1xf32>
      %128 = arith.divf %126, %127 : vector<2x1xf32>
      %129 = vector.broadcast %128 : vector<2x1xf32> to vector<2x128xf32>
      %130 = arith.subf %120, %129 : vector<2x128xf32>
      %131 = arith.mulf %130, %130 : vector<2x128xf32>
      %cst_80 = arith.constant dense<0.000000e+00> : vector<2xf32>
      %132 = vector.multi_reduction <add>, %131, %cst_80 [1] : vector<2x128xf32> to vector<2xf32>
      %133 = vector.shape_cast %132 : vector<2xf32> to vector<2x1xf32>
      %cst_81 = arith.constant 1.280000e+02 : f32
      %134 = vector.broadcast %cst_81 : f32 to vector<2x1xf32>
      %135 = arith.divf %133, %134 : vector<2x1xf32>
      %136 = vector.broadcast %128 : vector<2x1xf32> to vector<2x128xf32>
      %137 = arith.subf %120, %136 : vector<2x128xf32>
      %cst_82 = arith.constant 9.99999974E-6 : f32
      %138 = vector.broadcast %cst_82 : f32 to vector<2x1xf32>
      %139 = arith.addf %135, %138 : vector<2x1xf32>
      %140 = math.rsqrt %139 : vector<2x1xf32>
      %141 = vector.broadcast %140 : vector<2x1xf32> to vector<2x128xf32>
      %142 = arith.mulf %137, %141 : vector<2x128xf32>
      %143 = vector.broadcast %122 : vector<1x128xf32> to vector<2x128xf32>
      %144 = arith.mulf %142, %143 : vector<2x128xf32>
      %145 = vector.broadcast %124 : vector<1x128xf32> to vector<2x128xf32>
      %146 = arith.addf %144, %145 : vector<2x128xf32>
      %cst_83 = arith.constant 0.000000e+00 : f32
      %147 = vector.broadcast %cst_83 : f32 to vector<2x128xf32>
      %148 = arith.maximumf %146, %147 : vector<2x128xf32>
      %c0_84 = arith.constant 0 : index
      %c0_85 = arith.constant 0 : index
      %149 = vector.load %arg14[%c0_84, %c0_85] : memref<2x128xf32, #tpu.memory_space<vmem>>, vector<2x128xf32>
      tpu.vector_store %arg14[%c0_84, %c0_85], %148 {strides = array<i32>} : memref<2x128xf32, #tpu.memory_space<vmem>>, vector<2x128xf32>,
      %c0_86 = arith.constant 0 : index
      %c0_87 = arith.constant 0 : index
      %150 = vector.load %arg19[%c0_86, %c0_87] : memref<16x2xbf16, #tpu.memory_space<vmem>>, vector<16x2xbf16>
      %151 = arith.truncf %148 : vector<2x128xf32> to vector<2x128xbf16>
      %cst_88 = arith.constant dense<0.000000e+00> : vector<16x128xf32>
      %152 = tpu.matmul %150, %151, %cst_88 {dimension_numbers = #tpu.dot_dimension_numbers<[1], [0], [0], [1], [0, 0, 1, 1], [], []>} : vector<16x2xbf16>, vector<2x128xbf16>, vector<16x128xf32> -> vector<16x128xf32>
      %153 = arith.addf %71, %152 : vector<16x128xf32>
      %c0_89 = arith.constant 0 : index
      %c0_90 = arith.constant 0 : index
      %154 = vector.load %arg15[%c0_89, %c0_90] : memref<16x128xf32, #tpu.memory_space<vmem>>, vector<16x128xf32>
      tpu.vector_store %arg15[%c0_89, %c0_90], %153 {strides = array<i32>} : memref<16x128xf32, #tpu.memory_space<vmem>>, vector<16x128xf32>,
    } else {
    }
    %c0 = arith.constant 0 : index
    %c0_3 = arith.constant 0 : index
    %6 = vector.load %arg15[%c0, %c0_3] : memref<16x128xf32, #tpu.memory_space<vmem>>, vector<16x128xf32>
    %c0_4 = arith.constant 0 : index
    %c0_5 = arith.constant 0 : index
    %7 = vector.load %arg16[%c0_4, %c0_5] : memref<32x16xbf16, #tpu.memory_space<vmem>>, vector<32x16xbf16>
    %8 = arith.truncf %6 : vector<16x128xf32> to vector<16x128xbf16>
    %cst = arith.constant dense<0.000000e+00> : vector<32x128xf32>
    %9 = tpu.matmul %7, %8, %cst {dimension_numbers = #tpu.dot_dimension_numbers<[1], [0], [0], [1], [0, 0, 1, 1], [], []>} : vector<32x16xbf16>, vector<16x128xbf16>, vector<32x128xf32> -> vector<32x128xf32>
    %c0_6 = arith.constant 0 : index
    %c0_7 = arith.constant 0 : index
    %10 = vector.load %arg6[%c0_6, %c0_7] : memref<32x128xf32, #tpu.memory_space<vmem>>, vector<32x128xf32>
    %11 = arith.addf %9, %10 : vector<32x128xf32>
    %cst_8 = arith.constant 0.000000e+00 : f32
    %12 = vector.broadcast %cst_8 : f32 to vector<32x128xf32>
    %13 = arith.maximumf %11, %12 : vector<32x128xf32>
    %cst_9 = arith.constant 1.000000e-07 : f32
    %14 = vector.broadcast %cst_9 : f32 to vector<32x128xf32>
    %15 = arith.addf %13, %14 : vector<32x128xf32>
    %c0_10 = arith.constant 0 : index
    %c0_11 = arith.constant 0 : index
    %16 = vector.load %arg17[%c0_10, %c0_11] : memref<16x32xbf16, #tpu.memory_space<vmem>>, vector<16x32xbf16>
    %17 = arith.truncf %15 : vector<32x128xf32> to vector<32x128xbf16>
    %cst_12 = arith.constant dense<0.000000e+00> : vector<16x128xf32>
    %18 = tpu.matmul %16, %17, %cst_12 {dimension_numbers = #tpu.dot_dimension_numbers<[1], [0], [0], [1], [0, 0, 1, 1], [], []>} : vector<16x32xbf16>, vector<32x128xbf16>, vector<16x128xf32> -> vector<16x128xf32>
    %19 = arith.addf %6, %18 : vector<16x128xf32>
    %20 = arith.truncf %19 : vector<16x128xf32> to vector<16x128xbf16>
    %c0_13 = arith.constant 0 : index
    %c0_14 = arith.constant 0 : index
    %c0_15 = arith.constant 0 : index
    %21 = vector.load %arg7[%c0_13, %c0_14, %c0_15] : memref<1x128x128xbf16, #tpu.memory_space<vmem>>, vector<1x128x128xbf16>
    %22 = vector.shape_cast %21 : vector<1x128x128xbf16> to vector<128x128xbf16>
    %cst_16 = arith.constant dense<0.000000e+00> : vector<16x128xf32>
    %23 = tpu.matmul %20, %22, %cst_16 {dimension_numbers = #tpu.dot_dimension_numbers<[1], [0], [0], [1], [0, 0, 1, 1], [], []>} : vector<16x128xbf16>, vector<128x128xbf16>, vector<16x128xf32> -> vector<16x128xf32>
    %c0_17 = arith.constant 0 : index
    %c0_18 = arith.constant 0 : index
    %c0_19 = arith.constant 0 : index
    %24 = vector.load %arg10[%c0_17, %c0_18, %c0_19] : memref<1x9x128xf32, #tpu.memory_space<vmem>>, vector<1x1x128xf32>
    %25 = vector.shape_cast %24 : vector<1x1x128xf32> to vector<1x128xf32>
    %26 = vector.broadcast %25 : vector<1x128xf32> to vector<16x128xf32>
    %27 = arith.addf %23, %26 : vector<16x128xf32>
    %c0_20 = arith.constant 0 : index
    %c0_21 = arith.constant 0 : index
    %28 = vector.load %arg13[%c0_20, %c0_21] : memref<16x128xf32, #tpu.memory_space<vmem>>, vector<16x128xf32>
    %29 = arith.addf %27, %28 : vector<16x128xf32>
    %c0_22 = arith.constant 0 : index
    %c0_23 = arith.constant 0 : index
    %30 = vector.load %arg13[%c0_22, %c0_23] : memref<16x128xf32, #tpu.memory_space<vmem>>, vector<16x128xf32>
    tpu.vector_store %arg13[%c0_22, %c0_23], %29 {strides = array<i32>} : memref<16x128xf32, #tpu.memory_space<vmem>>, vector<16x128xf32>,
    %31 = arith.truncf %29 : vector<16x128xf32> to vector<16x128xbf16>
    %c0_24 = arith.constant 0 : index
    %c0_25 = arith.constant 0 : index
    %c0_26 = arith.constant 0 : index
    %32 = vector.load %arg8[%c0_24, %c0_25, %c0_26] : memref<1x128x32xbf16, #tpu.memory_space<vmem>>, vector<1x128x32xbf16>
    %33 = vector.shape_cast %32 : vector<1x128x32xbf16> to vector<128x32xbf16>
    %cst_27 = arith.constant dense<0.000000e+00> : vector<16x32xf32>
    %34 = tpu.matmul %31, %33, %cst_27 {dimension_numbers = #tpu.dot_dimension_numbers<[1], [0], [0], [1], [0, 0, 1, 1], [], []>} : vector<16x128xbf16>, vector<128x32xbf16>, vector<16x32xf32> -> vector<16x32xf32>
    %c0_28 = arith.constant 0 : index
    %c0_29 = arith.constant 0 : index
    %c0_30 = arith.constant 0 : index
    %35 = vector.load %arg9[%c0_28, %c0_29, %c0_30] : memref<1x1x32xf32, #tpu.memory_space<vmem>>, vector<1x1x32xf32>
    %36 = vector.shape_cast %35 : vector<1x1x32xf32> to vector<1x32xf32>
    %37 = vector.broadcast %36 : vector<1x32xf32> to vector<16x32xf32>
    %38 = arith.addf %34, %37 : vector<16x32xf32>
    %39 = arith.index_cast %arg0 : i32 to index
    %c0_31 = arith.constant 0 : index
    %c0_32 = arith.constant 0 : index
    %40 = vector.load %arg12[%39, %c0_31, %c0_32] : memref<4x16x32xf32, #tpu.memory_space<vmem>>, vector<1x16x32xf32>
    %41 = vector.shape_cast %40 : vector<1x16x32xf32> to vector<16x32xf32>
    %42 = vector.shape_cast %38 : vector<16x32xf32> to vector<1x16x32xf32>
    tpu.vector_store %arg12[%39, %c0_31, %c0_32], %42 {strides = array<i32>} : memref<4x16x32xf32, #tpu.memory_space<vmem>>, vector<1x16x32xf32>,
    return
  }
  func.func @transform_0(%arg0: i32) -> (i32, i32) {
    %c0_i32 = arith.constant 0 : i32
    %c0_i32_0 = arith.constant 0 : i32
    %c0_i32_1 = arith.constant 0 : i32
    return %c0_i32, %c0_i32_0 : i32, i32
  }
  func.func @transform_1(%arg0: i32) -> (i32, i32) {
    %c0_i32 = arith.constant 0 : i32
    %c0_i32_0 = arith.constant 0 : i32
    %c0_i32_1 = arith.constant 0 : i32
    return %c0_i32, %c0_i32_0 : i32, i32
  }
  func.func @transform_2(%arg0: i32) -> (i32, i32) {
    %c0_i32 = arith.constant 0 : i32
    %c0_i32_0 = arith.constant 0 : i32
    %c0_i32_1 = arith.constant 0 : i32
    return %c0_i32, %c0_i32_0 : i32, i32
  }
  func.func @transform_3(%arg0: i32) -> (i32, i32) {
    %c0_i32 = arith.constant 0 : i32
    %c0_i32_0 = arith.constant 0 : i32
    %c0_i32_1 = arith.constant 0 : i32
    return %c0_i32, %c0_i32_0 : i32, i32
  }
  func.func @transform_4(%arg0: i32) -> (i32, i32) {
    %c0_i32 = arith.constant 0 : i32
    %c0_i32_0 = arith.constant 0 : i32
    %c0_i32_1 = arith.constant 0 : i32
    return %c0_i32, %c0_i32_0 : i32, i32
  }
  func.func @transform_5(%arg0: i32) -> (i32, i32) {
    %c0_i32 = arith.constant 0 : i32
    %c0_i32_0 = arith.constant 0 : i32
    %c0_i32_1 = arith.constant 0 : i32
    return %c0_i32, %c0_i32_0 : i32, i32
  }
  func.func @transform_6(%arg0: i32) -> (i32, i32, i32) {
    %c0_i32 = arith.constant 0 : i32
    %c0_i32_0 = arith.constant 0 : i32
    %c0_i32_1 = arith.constant 0 : i32
    return %arg0, %c0_i32, %c0_i32_0 : i32, i32, i32
  }
  func.func @transform_7(%arg0: i32) -> (i32, i32, i32) {
    %c0_i32 = arith.constant 0 : i32
    %c0_i32_0 = arith.constant 0 : i32
    %c0_i32_1 = arith.constant 0 : i32
    return %arg0, %c0_i32, %c0_i32_0 : i32, i32, i32
  }
  func.func @transform_8(%arg0: i32) -> (i32, i32, i32) {
    %c0_i32 = arith.constant 0 : i32
    %c0_i32_0 = arith.constant 0 : i32
    %c0_i32_1 = arith.constant 0 : i32
    return %arg0, %c0_i32, %c0_i32_0 : i32, i32, i32
  }
  func.func @transform_9(%arg0: i32) -> (i32, i32, i32) {
    %c0_i32 = arith.constant 0 : i32
    %c0_i32_0 = arith.constant 0 : i32
    %c0_i32_1 = arith.constant 0 : i32
    return %arg0, %c0_i32, %c0_i32_0 : i32, i32, i32
  }
  func.func @transform_10(%arg0: i32) -> (i32, i32, i32, i32) {
    %c1_i32 = arith.constant 1 : i32
    %0 = arith.maxsi %arg0, %c1_i32 : i32
    %c1_i32_0 = arith.constant 1 : i32
    %1 = arith.subi %0, %c1_i32_0 : i32
    %c0_i32 = arith.constant 0 : i32
    %c0_i32_1 = arith.constant 0 : i32
    %c0_i32_2 = arith.constant 0 : i32
    %c0_i32_3 = arith.constant 0 : i32
    return %1, %c0_i32, %c0_i32_1, %c0_i32_2 : i32, i32, i32, i32
  }
  func.func @transform_11(%arg0: i32) -> (i32, i32, i32) {
    %c0_i32 = arith.constant 0 : i32
    %c0_i32_0 = arith.constant 0 : i32
    %c0_i32_1 = arith.constant 0 : i32
    %c0_i32_2 = arith.constant 0 : i32
    return %c0_i32, %c0_i32_0, %c0_i32_1 : i32, i32, i32
  }
}

</mosaic_0001>

<llo_original>
// kernel: deeper_gcn_forward.1
$region0: #{deeper_gcn_forward.1}
  #allocation0 [shape = 'u32[]', space=smem, size = 0x4, offset = 0x4, fixed_abs, tag = 'smem constant byte address 0x4 - core index']
  #allocation1 [shape = 'u32[144,128]{1,0:T(1,128)}', space=vmem, size = 0x12000, scoped, tag = 'internal scratch']
  #allocation2 [shape = 'f32[16,128]{1,0:T(8,128)}', space=vmem, size = 0x2000, scoped, tag = 'scratch operand']
  #allocation3 [shape = 'f32[2,128]{1,0:T(2,128)}', space=vmem, size = 0x400, scoped, tag = 'scratch operand']
  #allocation4 [shape = 'f32[16,128]{1,0:T(8,128)}', space=vmem, size = 0x2000, scoped, tag = 'scratch operand']
  #allocation5 [shape = 'bf16[32,16]{1,0:T(16,128)(2,1)}', space=vmem, size = 0x2000, scoped, tag = 'scratch operand']
  #allocation6 [shape = 'bf16[16,32]{1,0:T(16,128)(2,1)}', space=vmem, size = 0x1000, scoped, tag = 'scratch operand']
  #allocation7 [shape = 'bf16[2,16]{1,0:T(2,128)(2,1)}', space=vmem, size = 0x200, scoped, tag = 'scratch operand']
  #allocation8 [shape = 'bf16[16,2]{1,0:T(16,128)(2,1)}', space=vmem, size = 0x1000, scoped, tag = 'scratch operand']
  %s0 = inlined_call_operand.vmem [shape: s32[32,1], index: 0, kind: input, shape index: {}]
  %s1 = inlined_call_operand.vmem [shape: s32[1,32], index: 1, kind: input, shape index: {}]
  %s2 = inlined_call_operand.vmem [shape: s32[1,16], index: 2, kind: input, shape index: {}]
  %s3 = inlined_call_operand.vmem [shape: s32[16,1], index: 3, kind: input, shape index: {}]
  %s4 = inlined_call_operand.vmem [shape: f32[16,128], index: 4, kind: input, shape index: {}]
  %s5 = inlined_call_operand.vmem [shape: f32[32,128], index: 5, kind: input, shape index: {}]
  %s6 = inlined_call_operand.vmem [shape: bf16[4,128,128], index: 6, kind: input, shape index: {}]
  %s7 = inlined_call_operand.vmem [shape: bf16[4,128,32], index: 7, kind: input, shape index: {}]
  %s8 = inlined_call_operand.vmem [shape: f32[4,1,32], index: 8, kind: input, shape index: {}]
  %s9 = inlined_call_operand.vmem [shape: f32[4,9,128], index: 9, kind: input, shape index: {}]
  %s10 = inlined_call_operand.vmem [shape: bf16[3,2,128,128], index: 10, kind: input, shape index: {}]
  %s11 = inlined_call_operand.vmem [shape: f32[4,16,32], index: 11, kind: output, shape index: {}]
  %s12 = sld [smem:[#allocation0]]
  $region85: #{deeper_gcn_forward.1} parent=0
    _
  %s14 = ssub.s32 1, %s12
  %s15 = scalar_select 0, %s14, %s12
  loop: start=0, step=1, limit=6
  $region2: #{deeper_gcn_forward.1} parent=0 // loop_pre_header
    _
  $region3: #{deeper_gcn_forward.1} parent=0 // loop_header
    %s17 = sphi 0, %s21
    %p18 = scmp.ge.s32.totalorder %s17, 6
    %s25 = sphi 0, %s25
    %s27 = sphi 0, %s25
    %s28 = sphi 0, %s27
    %s42 = sphi 0, %s28
    %s46 = sphi 0, %s46
    %s48 = sphi 0, %s46
    %s49 = sphi 0, %s48
    %s63 = sphi 0, %s49
    %s67 = sphi 0, %s67
    %s69 = sphi 0, %s67
    %s70 = sphi 0, %s69
    %s84 = sphi 0, %s70
    %s88 = sphi 0, %s88
    %s90 = sphi 0, %s88
    %s91 = sphi 0, %s90
    %s105 = sphi 0, %s91
    %s109 = sphi 0, %s109
    %s111 = sphi 0, %s109
    %s112 = sphi 0, %s111
    %s126 = sphi 0, %s112
    %s130 = sphi 0, %s130
    %s132 = sphi 0, %s130
    %s133 = sphi 0, %s132
    %s147 = sphi 0, %s133
    %s153 = sphi 0, %s155
    %s156 = sphi 0, %s153
    %s157 = sphi 0, %s156
    %s173 = sphi 0, %s157
    %s179 = sphi 0, %s181
    %s182 = sphi 0, %s179
    %s183 = sphi 0, %s182
    %s199 = sphi 0, %s183
    %s205 = sphi 0, %s207
    %s208 = sphi 0, %s205
    %s209 = sphi 0, %s208
    %s225 = sphi 0, %s209
    %s231 = sphi 0, %s233
    %s234 = sphi 0, %s231
    %s235 = sphi 0, %s234
    %s251 = sphi 0, %s235
    %s263 = sphi 0, %s265
    %s266 = sphi 0, %s263
    %s267 = sphi 0, %s266
    %s283 = sphi 0, %s267
    %s287 = sphi 0, %s287
    %s289 = sphi 0, %s287
    %s290 = sphi 0, %s289
    %s304 = sphi 0, %s290
  $region4: #{deeper_gcn_forward.1} parent=0 // loop_header_branch
    %20 = sbr.rel (%p18) target = $region8
  $region5: #{deeper_gcn_forward.1} parent=0 // loop_body
    %s22 = ssub.s32 %s17, 1
    %s23 = ssub.s32 %s17, 2
    %s24 = sadd.s32 %s17, 1
    %s26 = sadd.s32 %s25, 1
    %p29 = scmp.eq.s32.totalorder %s17, 3
    %p30 = scmp.ne.s32.totalorder %s25, %s27
    %p31 = scmp.eq.s32.totalorder %s17, 0
    %p32 = por %p30, %p31
    %p33 = scmp.ne.s32.totalorder %s25, %s27
    %p34 = scmp.eq.s32.totalorder %s22, 3
    %p35 = por %p33, %p34
    %p36 = scmp.ne.s32.totalorder %s27, %s28
    %p37 = scmp.eq.s32.totalorder %s22, 0
    %p38 = por %p36, %p37
    %p39 = scmp.ne.s32.totalorder %s27, %s28
    %p40 = scmp.eq.s32.totalorder %s23, 3
    %p41 = por %p39, %p40
    %p43 = scmp.ne.s32.totalorder %s28, %s42
    %p44 = scmp.eq.s32.totalorder %s23, 0
    %p45 = por %p43, %p44
    %s47 = sadd.s32 %s46, 1
    %p50 = scmp.eq.s32.totalorder %s17, 3
    %p51 = scmp.ne.s32.totalorder %s46, %s48
    %p52 = scmp.eq.s32.totalorder %s17, 0
    %p53 = por %p51, %p52
    %p54 = scmp.ne.s32.totalorder %s46, %s48
    %p55 = scmp.eq.s32.totalorder %s22, 3
    %p56 = por %p54, %p55
    %p57 = scmp.ne.s32.totalorder %s48, %s49
    %p58 = scmp.eq.s32.totalorder %s22, 0
    %p59 = por %p57, %p58
    %p60 = scmp.ne.s32.totalorder %s48, %s49
    %p61 = scmp.eq.s32.totalorder %s23, 3
    %p62 = por %p60, %p61
    %p64 = scmp.ne.s32.totalorder %s49, %s63
    %p65 = scmp.eq.s32.totalorder %s23, 0
    %p66 = por %p64, %p65
    %s68 = sadd.s32 %s67, 1
    %p71 = scmp.eq.s32.totalorder %s17, 3
    %p72 = scmp.ne.s32.totalorder %s67, %s69
    %p73 = scmp.eq.s32.totalorder %s17, 0
    %p74 = por %p72, %p73
    %p75 = scmp.ne.s32.totalorder %s67, %s69
    %p76 = scmp.eq.s32.totalorder %s22, 3
    %p77 = por %p75, %p76
    %p78 = scmp.ne.s32.totalorder %s69, %s70
    %p79 = scmp.eq.s32.totalorder %s22, 0
    %p80 = por %p78, %p79
    %p81 = scmp.ne.s32.totalorder %s69, %s70
    %p82 = scmp.eq.s32.totalorder %s23, 3
    %p83 = por %p81, %p82
    %p85 = scmp.ne.s32.totalorder %s70, %s84
    %p86 = scmp.eq.s32.totalorder %s23, 0
    %p87 = por %p85, %p86
    %s89 = sadd.s32 %s88, 1
    %p92 = scmp.eq.s32.totalorder %s17, 3
    %p93 = scmp.ne.s32.totalorder %s88, %s90
    %p94 = scmp.eq.s32.totalorder %s17, 0
    %p95 = por %p93, %p94
    %p96 = scmp.ne.s32.totalorder %s88, %s90
    %p97 = scmp.eq.s32.totalorder %s22, 3
    %p98 = por %p96, %p97
    %p99 = scmp.ne.s32.totalorder %s90, %s91
    %p100 = scmp.eq.s32.totalorder %s22, 0
    %p101 = por %p99, %p100
    %p102 = scmp.ne.s32.totalorder %s90, %s91
    %p103 = scmp.eq.s32.totalorder %s23, 3
    %p104 = por %p102, %p103
    %p106 = scmp.ne.s32.totalorder %s91, %s105
    %p107 = scmp.eq.s32.totalorder %s23, 0
    %p108 = por %p106, %p107
    %s110 = sadd.s32 %s109, 1
    %p113 = scmp.eq.s32.totalorder %s17, 3
    %p114 = scmp.ne.s32.totalorder %s109, %s111
    %p115 = scmp.eq.s32.totalorder %s17, 0
    %p116 = por %p114, %p115
    %p117 = scmp.ne.s32.totalorder %s109, %s111
    %p118 = scmp.eq.s32.totalorder %s22, 3
    %p119 = por %p117, %p118
    %p120 = scmp.ne.s32.totalorder %s111, %s112
    %p121 = scmp.eq.s32.totalorder %s22, 0
    %p122 = por %p120, %p121
    %p123 = scmp.ne.s32.totalorder %s111, %s112
    %p124 = scmp.eq.s32.totalorder %s23, 3
    %p125 = por %p123, %p124
    %p127 = scmp.ne.s32.totalorder %s112, %s126
    %p128 = scmp.eq.s32.totalorder %s23, 0
    %p129 = por %p127, %p128
    %s131 = sadd.s32 %s130, 1
    %p134 = scmp.eq.s32.totalorder %s17, 3
    %p135 = scmp.ne.s32.totalorder %s130, %s132
    %p136 = scmp.eq.s32.totalorder %s17, 0
    %p137 = por %p135, %p136
    %p138 = scmp.ne.s32.totalorder %s130, %s132
    %p139 = scmp.eq.s32.totalorder %s22, 3
    %p140 = por %p138, %p139
    %p141 = scmp.ne.s32.totalorder %s132, %s133
    %p142 = scmp.eq.s32.totalorder %s22, 0
    %p143 = por %p141, %p142
    %p144 = scmp.ne.s32.totalorder %s132, %s133
    %p145 = scmp.eq.s32.totalorder %s23, 3
    %p146 = por %p144, %p145
    %p148 = scmp.ne.s32.totalorder %s133, %s147
    %p149 = scmp.eq.s32.totalorder %s23, 0
    %p150 = por %p148, %p149
    %s151 = ssub.s32 %s17, %s24
    %p152 = scmp.eq.s32.totalorder %s151, 0
    %s154 = sadd.s32 %s153, 1
    %s155 = scalar_select %p152, %s153, %s154
    %p158 = pneg %p152
    %p159 = scmp.eq.s32.totalorder %s17, 3
    %p160 = por %p158, %p159
    %p161 = scmp.ne.s32.totalorder %s153, %s156
    %p162 = scmp.eq.s32.totalorder %s17, 0
    %p163 = por %p161, %p162
    %p164 = scmp.ne.s32.totalorder %s153, %s156
    %p165 = scmp.eq.s32.totalorder %s22, 3
    %p166 = por %p164, %p165
    %p167 = scmp.ne.s32.totalorder %s156, %s157
    %p168 = scmp.eq.s32.totalorder %s22, 0
    %p169 = por %p167, %p168
    %p170 = scmp.ne.s32.totalorder %s156, %s157
    %p171 = scmp.eq.s32.totalorder %s23, 3
    %p172 = por %p170, %p171
    %p174 = scmp.ne.s32.totalorder %s157, %s173
    %p175 = scmp.eq.s32.totalorder %s23, 0
    %p176 = por %p174, %p175
    %s177 = ssub.s32 %s17, %s24
    %p178 = scmp.eq.s32.totalorder %s177, 0
    %s180 = sadd.s32 %s179, 1
    %s181 = scalar_select %p178, %s179, %s180
    %p184 = pneg %p178
    %p185 = scmp.eq.s32.totalorder %s17, 3
    %p186 = por %p184, %p185
    %p187 = scmp.ne.s32.totalorder %s179, %s182
    %p188 = scmp.eq.s32.totalorder %s17, 0
    %p189 = por %p187, %p188
    %p190 = scmp.ne.s32.totalorder %s179, %s182
    %p191 = scmp.eq.s32.totalorder %s22, 3
    %p192 = por %p190, %p191
    %p193 = scmp.ne.s32.totalorder %s182, %s183
    %p194 = scmp.eq.s32.totalorder %s22, 0
    %p195 = por %p193, %p194
    %p196 = scmp.ne.s32.totalorder %s182, %s183
    %p197 = scmp.eq.s32.totalorder %s23, 3
    %p198 = por %p196, %p197
    %p200 = scmp.ne.s32.totalorder %s183, %s199
    %p201 = scmp.eq.s32.totalorder %s23, 0
    %p202 = por %p200, %p201
    %s203 = ssub.s32 %s17, %s24
    %p204 = scmp.eq.s32.totalorder %s203, 0
    %s206 = sadd.s32 %s205, 1
    %s207 = scalar_select %p204, %s205, %s206
    %p210 = pneg %p204
    %p211 = scmp.eq.s32.totalorder %s17, 3
    %p212 = por %p210, %p211
    %p213 = scmp.ne.s32.totalorder %s205, %s208
    %p214 = scmp.eq.s32.totalorder %s17, 0
    %p215 = por %p213, %p214
    %p216 = scmp.ne.s32.totalorder %s205, %s208
    %p217 = scmp.eq.s32.totalorder %s22, 3
    %p218 = por %p216, %p217
    %p219 = scmp.ne.s32.totalorder %s208, %s209
    %p220 = scmp.eq.s32.totalorder %s22, 0
    %p221 = por %p219, %p220
    %p222 = scmp.ne.s32.totalorder %s208, %s209
    %p223 = scmp.eq.s32.totalorder %s23, 3
    %p224 = por %p222, %p223
    %p226 = scmp.ne.s32.totalorder %s209, %s225
    %p227 = scmp.eq.s32.totalorder %s23, 0
    %p228 = por %p226, %p227
    %s229 = ssub.s32 %s17, %s24
    %p230 = scmp.eq.s32.totalorder %s229, 0
    %s232 = sadd.s32 %s231, 1
    %s233 = scalar_select %p230, %s231, %s232
    %p236 = pneg %p230
    %p237 = scmp.eq.s32.totalorder %s17, 3
    %p238 = por %p236, %p237
    %p239 = scmp.ne.s32.totalorder %s231, %s234
    %p240 = scmp.eq.s32.totalorder %s17, 0
    %p241 = por %p239, %p240
    %p242 = scmp.ne.s32.totalorder %s231, %s234
    %p243 = scmp.eq.s32.totalorder %s22, 3
    %p244 = por %p242, %p243
    %p245 = scmp.ne.s32.totalorder %s234, %s235
    %p246 = scmp.eq.s32.totalorder %s22, 0
    %p247 = por %p245, %p246
    %p248 = scmp.ne.s32.totalorder %s234, %s235
    %p249 = scmp.eq.s32.totalorder %s23, 3
    %p250 = por %p248, %p249
    %p252 = scmp.ne.s32.totalorder %s235, %s251
    %p253 = scmp.eq.s32.totalorder %s23, 0
    %p254 = por %p252, %p253
    %p255 = scmp.gt.s32.totalorder %s17, 1
    %s256 = scalar_select %p255, %s17, 1
    %s257 = ssub.s32 %s256, 1
    %p258 = scmp.gt.s32.totalorder %s24, 1
    %s259 = scalar_select %p258, %s24, 1
    %s260 = ssub.s32 %s259, 1
    %s261 = ssub.s32 %s257, %s260
    %p262 = scmp.eq.s32.totalorder %s261, 0
    %s264 = sadd.s32 %s263, 1
    %s265 = scalar_select %p262, %s263, %s264
    %p268 = pneg %p262
    %p269 = scmp.eq.s32.totalorder %s17, 3
    %p270 = por %p268, %p269
    %p271 = scmp.ne.s32.totalorder %s263, %s266
    %p272 = scmp.eq.s32.totalorder %s17, 0
    %p273 = por %p271, %p272
    %p274 = scmp.ne.s32.totalorder %s263, %s266
    %p275 = scmp.eq.s32.totalorder %s22, 3
    %p276 = por %p274, %p275
    %p277 = scmp.ne.s32.totalorder %s266, %s267
    %p278 = scmp.eq.s32.totalorder %s22, 0
    %p279 = por %p277, %p278
    %p280 = scmp.ne.s32.totalorder %s266, %s267
    %p281 = scmp.eq.s32.totalorder %s23, 3
    %p282 = por %p280, %p281
    %p284 = scmp.ne.s32.totalorder %s267, %s283
    %p285 = scmp.eq.s32.totalorder %s23, 0
    %p286 = por %p284, %p285
    %s288 = sadd.s32 %s287, 1
    %p291 = scmp.eq.s32.totalorder %s17, 3
    %p292 = scmp.ne.s32.totalorder %s287, %s289
    %p293 = scmp.eq.s32.totalorder %s17, 0
    %p294 = por %p292, %p293
    %p295 = scmp.ne.s32.totalorder %s287, %s289
    %p296 = scmp.eq.s32.totalorder %s22, 3
    %p297 = por %p295, %p296
    %p298 = scmp.ne.s32.totalorder %s289, %s290
    %p299 = scmp.eq.s32.totalorder %s22, 0
    %p300 = por %p298, %p299
    %p301 = scmp.ne.s32.totalorder %s289, %s290
    %p302 = scmp.eq.s32.totalorder %s23, 3
    %p303 = por %p301, %p302
    %p305 = scmp.ne.s32.totalorder %s290, %s304
    %p306 = scmp.eq.s32.totalorder %s23, 0
    %p307 = por %p305, %p306
    %p308 = scmp.le.s32.totalorder 1, %s17
    %p309 = scmp.lt.s32.totalorder %s17, 5
    %p310 = pnand %p308, %p309
    %p311 = pneg %p310
    // Predicated region
    $region9: #{deeper_gcn_forward.1} parent=5 // pred_check
      _
    $region10: #{deeper_gcn_forward.1} parent=5 // pred_check_branch
      %313 = sbr.rel (%p310) target = $region12
    $region11: #{deeper_gcn_forward.1} parent=5 // pred_region
      %s314 = ssub.s32 %s17, 1
      // Predicated region
      $region13: #{deeper_gcn_forward.1} parent=11 // pred_check
        %p315 = pneg %p38
      $region14: #{deeper_gcn_forward.1} parent=11 // pred_check_branch
        %317 = sbr.rel (%p315) target = $region16
      $region15: #{deeper_gcn_forward.1} parent=11 // pred_region
        _
      $region16: #{deeper_gcn_forward.1} parent=11 // pred_fallthru
        _
      // Predicated region
      $region17: #{deeper_gcn_forward.1} parent=11 // pred_check
        %p318 = pneg %p59
      $region18: #{deeper_gcn_forward.1} parent=11 // pred_check_branch
        %320 = sbr.rel (%p318) target = $region20
      $region19: #{deeper_gcn_forward.1} parent=11 // pred_region
        _
      $region20: #{deeper_gcn_forward.1} parent=11 // pred_fallthru
        _
      // Predicated region
      $region21: #{deeper_gcn_forward.1} parent=11 // pred_check
        %p321 = pneg %p80
      $region22: #{deeper_gcn_forward.1} parent=11 // pred_check_branch
        %323 = sbr.rel (%p321) target = $region24
      $region23: #{deeper_gcn_forward.1} parent=11 // pred_region
        _
      $region24: #{deeper_gcn_forward.1} parent=11 // pred_fallthru
        _
      // Predicated region
      $region25: #{deeper_gcn_forward.1} parent=11 // pred_check
        %p324 = pneg %p101
      $region26: #{deeper_gcn_forward.1} parent=11 // pred_check_branch
        %326 = sbr.rel (%p324) target = $region28
      $region27: #{deeper_gcn_forward.1} parent=11 // pred_region
        _
      $region28: #{deeper_gcn_forward.1} parent=11 // pred_fallthru
        _
      // Predicated region
      $region29: #{deeper_gcn_forward.1} parent=11 // pred_check
        %p327 = pneg %p122
      $region30: #{deeper_gcn_forward.1} parent=11 // pred_check_branch
        %329 = sbr.rel (%p327) target = $region32
      $region31: #{deeper_gcn_forward.1} parent=11 // pred_region
        _
      $region32: #{deeper_gcn_forward.1} parent=11 // pred_fallthru
        _
      // Predicated region
      $region33: #{deeper_gcn_forward.1} parent=11 // pred_check
        %p330 = pneg %p143
      $region34: #{deeper_gcn_forward.1} parent=11 // pred_check_branch
        %332 = sbr.rel (%p330) target = $region36
      $region35: #{deeper_gcn_forward.1} parent=11 // pred_region
        _
      $region36: #{deeper_gcn_forward.1} parent=11 // pred_fallthru
        _
    $region12: #{deeper_gcn_forward.1} parent=5 // pred_fallthru
      _
    %p333 = scmp.lt.s32.totalorder %s17, 4
    // Predicated region
    $region37: #{deeper_gcn_forward.1} parent=5 // pred_check
      %p334 = pneg %p333
    $region38: #{deeper_gcn_forward.1} parent=5 // pred_check_branch
      %336 = sbr.rel (%p334) target = $region40
    $region39: #{deeper_gcn_forward.1} parent=5 // pred_region
      // Predicated region
      $region41: #{deeper_gcn_forward.1} parent=39 // pred_check
        %p337 = pneg %p163
      $region42: #{deeper_gcn_forward.1} parent=39 // pred_check_branch
        %339 = sbr.rel (%p337) target = $region44
      $region43: #{deeper_gcn_forward.1} parent=39 // pred_region
        %p340 = scmp.lt.s32.totalorder %s17, 3
        %s341 = scalar_select %p340, %s17, 3
        %s342 = smul.addr %s341, 16
        %s343 = smul.addr %s342, 4
        %s344 = scalar_lea.vmem %s6, %s343
      $region44: #{deeper_gcn_forward.1} parent=39 // pred_fallthru
        _
      // Predicated region
      $region45: #{deeper_gcn_forward.1} parent=39 // pred_check
        %p345 = pneg %p189
      $region46: #{deeper_gcn_forward.1} parent=39 // pred_check_branch
        %347 = sbr.rel (%p345) target = $region48
      $region47: #{deeper_gcn_forward.1} parent=39 // pred_region
        %p348 = scmp.lt.s32.totalorder %s17, 3
        %s349 = scalar_select %p348, %s17, 3
        %s350 = smul.addr %s349, 16
        %s351 = smul.addr %s350, 4
        %s352 = scalar_lea.vmem %s7, %s351
      $region48: #{deeper_gcn_forward.1} parent=39 // pred_fallthru
        _
      // Predicated region
      $region49: #{deeper_gcn_forward.1} parent=39 // pred_check
        %p353 = pneg %p215
      $region50: #{deeper_gcn_forward.1} parent=39 // pred_check_branch
        %355 = sbr.rel (%p353) target = $region52
      $region51: #{deeper_gcn_forward.1} parent=39 // pred_region
        %p356 = scmp.lt.s32.totalorder %s17, 3
        %s357 = scalar_select %p356, %s17, 3
        %s358 = scalar_lea.vmem %s8, %s357
      $region52: #{deeper_gcn_forward.1} parent=39 // pred_fallthru
        _
      // Predicated region
      $region53: #{deeper_gcn_forward.1} parent=39 // pred_check
        %p359 = pneg %p241
      $region54: #{deeper_gcn_forward.1} parent=39 // pred_check_branch
        %361 = sbr.rel (%p359) target = $region56
      $region55: #{deeper_gcn_forward.1} parent=39 // pred_region
        %p362 = scmp.lt.s32.totalorder %s17, 3
        %s363 = scalar_select %p362, %s17, 3
        %s364 = smul.addr %s363, 2
        %s365 = smul.addr %s364, 8
        %s366 = scalar_lea.vmem %s9, %s365
      $region56: #{deeper_gcn_forward.1} parent=39 // pred_fallthru
        _
      // Predicated region
      $region57: #{deeper_gcn_forward.1} parent=39 // pred_check
        %p367 = pneg %p273
      $region58: #{deeper_gcn_forward.1} parent=39 // pred_check_branch
        %369 = sbr.rel (%p367) target = $region60
      $region59: #{deeper_gcn_forward.1} parent=39 // pred_region
        %p370 = scmp.gt.s32.totalorder %s17, 1
        %s371 = scalar_select %p370, %s17, 1
        %s372 = ssub.s32 %s371, 1
        %p373 = scmp.lt.s32.totalorder %s372, 2
        %s374 = scalar_select %p373, %s372, 2
        %s375 = smul.addr %s374, 32
        %s376 = smul.addr %s375, 4
        %s377 = scalar_lea.vmem %s10, %s376
        %p378 = scmp.gt.s32.totalorder %s17, 1
        %s379 = scalar_select %p378, %s17, 1
        %s380 = ssub.s32 %s379, 1
      $region60: #{deeper_gcn_forward.1} parent=39 // pred_fallthru
        _
    $region40: #{deeper_gcn_forward.1} parent=5 // pred_fallthru
      _
    %p381 = scmp.le.s32.totalorder 1, %s17
    %p382 = scmp.lt.s32.totalorder %s17, 5
    %p383 = pnand %p381, %p382
    %p384 = pneg %p383
    // Predicated region
    $region61: #{deeper_gcn_forward.1} parent=5 // pred_check
      _
    $region62: #{deeper_gcn_forward.1} parent=5 // pred_check_branch
      %386 = sbr.rel (%p383) target = $region64
    $region63: #{deeper_gcn_forward.1} parent=5 // pred_region
      %s387 = ssub.s32 %s17, 1
      %p388 = pneg %p38
      %p389 = pneg %p35
      %p390 = pneg %p59
      %p391 = pneg %p56
      %p392 = pneg %p80
      %p393 = pneg %p77
      %p394 = pneg %p101
      %p395 = pneg %p98
      %p396 = pneg %p122
      %p397 = pneg %p119
      %p398 = pneg %p143
      %p399 = pneg %p140
      %p400 = scmp.lt.s32.totalorder %s22, 3
      %s401 = scalar_select %p400, %s22, 3
      %s402 = smul.addr %s401, 16
      %s403 = smul.addr %s402, 4
      %s404 = scalar_lea.vmem %s6, %s403
      %p405 = pneg %p169
      %p406 = pneg %p166
      %p407 = scmp.lt.s32.totalorder %s22, 3
      %s408 = scalar_select %p407, %s22, 3
      %s409 = smul.addr %s408, 16
      %s410 = smul.addr %s409, 4
      %s411 = scalar_lea.vmem %s7, %s410
      %p412 = pneg %p195
      %p413 = pneg %p192
      %p414 = scmp.lt.s32.totalorder %s22, 3
      %s415 = scalar_select %p414, %s22, 3
      %s416 = scalar_lea.vmem %s8, %s415
      %p417 = pneg %p221
      %p418 = pneg %p218
      %p419 = scmp.lt.s32.totalorder %s22, 3
      %s420 = scalar_select %p419, %s22, 3
      %s421 = smul.addr %s420, 2
      %s422 = smul.addr %s421, 8
      %s423 = scalar_lea.vmem %s9, %s422
      %p424 = pneg %p247
      %p425 = pneg %p244
      %p426 = scmp.gt.s32.totalorder %s22, 1
      %s427 = scalar_select %p426, %s22, 1
      %s428 = ssub.s32 %s427, 1
      %p429 = scmp.lt.s32.totalorder %s428, 2
      %s430 = scalar_select %p429, %s428, 2
      %s431 = smul.addr %s430, 32
      %s432 = smul.addr %s431, 4
      %s433 = scalar_lea.vmem %s10, %s432
      %p434 = pneg %p279
      %p435 = pneg %p276
      %p436 = pneg %p300
      %p437 = pneg %p297
      %p438 = scmp.lt.s32.totalorder %s22, 3
      %s439 = scalar_select %p438, %s22, 3
      %s440 = smul.addr %s439, 16
      %s441 = smul.addr %s440, 4
      %s442 = scalar_lea.vmem %s6, %s441
      %p443 = scmp.lt.s32.totalorder %s22, 3
      %s444 = scalar_select %p443, %s22, 3
      %s445 = smul.addr %s444, 16
      %s446 = smul.addr %s445, 4
      %s447 = scalar_lea.vmem %s7, %s446
      %p448 = scmp.lt.s32.totalorder %s22, 3
      %s449 = scalar_select %p448, %s22, 3
      %s450 = scalar_lea.vmem %s8, %s449
      %p451 = scmp.lt.s32.totalorder %s22, 3
      %s452 = scalar_select %p451, %s22, 3
      %s453 = smul.addr %s452, 2
      %s454 = smul.addr %s453, 8
      %s455 = scalar_lea.vmem %s9, %s454
      %p456 = scmp.gt.s32.totalorder %s22, 1
      %s457 = scalar_select %p456, %s22, 1
      %s458 = ssub.s32 %s457, 1
      %p459 = scmp.lt.s32.totalorder %s458, 2
      %s460 = scalar_select %p459, %s458, 2
      %s461 = smul.addr %s460, 32
      %s462 = smul.addr %s461, 4
      %s463 = scalar_lea.vmem %s10, %s462
      %p464 = scmp.gt.s32.totalorder %s22, 1
      %s465 = scalar_select %p464, %s22, 1
      %s466 = ssub.s32 %s465, 1
      %p468 = scmp.eq.s32.totalorder %s22, 0
      // Predicated region
      $region65: #{deeper_gcn_forward.1} parent=63 // pred_check
        %p469 = pneg %p468
      $region66: #{deeper_gcn_forward.1} parent=63 // pred_check_branch
        %471 = sbr.rel (%p469) target = $region68
      $region67: #{deeper_gcn_forward.1} parent=63 // pred_region
        %472 = vst [vmem:[#allocation2] sm:$0xff] 0.0
        %473 = vst [vmem:[#allocation2 + $0x8] sm:$0xff] 0.0
        %v474 = vld [vmem:[%s4] sm:$0xff]
        %v475 = vld [vmem:[%s4 + $0x8] sm:$0xff]
        %476 = vst [vmem:[#allocation4] sm:$0xff] %v474
        %477 = vst [vmem:[#allocation4 + $0x8] sm:$0xff] %v475
        %478 = vst [vmem:[#allocation3] sm:$0x3] 0.0
        %v479 = vld [vmem:[%s0] sm:$0xff]
        %v480 = vld [vmem:[%s0 + $0x8] sm:$0xff]
        %v481 = vld [vmem:[%s0 + $0x10] sm:$0xff]
        %v482 = vld [vmem:[%s0 + $0x18] sm:$0xff]
        %v483 = vlaneseq
        %v484 = vand.u32 %v483, 127
        %485 = vset.pattern.permute.xlu0 0
        %486 = vperm.xlu0 %485, %v479
        %v487 = vpop.permute.xlu0 %486
        %488 = vset.pattern.permute.xlu0 0
        %489 = vperm.xlu0 %488, %v480
        %v490 = vpop.permute.xlu0 %489
        %491 = vset.pattern.permute.xlu0 0
        %492 = vperm.xlu0 %491, %v481
        %v493 = vpop.permute.xlu0 %492
        %494 = vset.pattern.permute.xlu0 0
        %495 = vperm.xlu0 %494, %v482
        %v496 = vpop.permute.xlu0 %495
        %vm497 = vcmp.eq.s32.totalorder %v487, %v484
        %vm498 = vcmp.eq.s32.totalorder %v490, %v484
        %vm499 = vcmp.eq.s32.totalorder %v493, %v484
        %vm500 = vcmp.eq.s32.totalorder %v496, %v484
        %v501 = vsel %vm497, 1, 0
        %v502 = vsel %vm498, 1, 0
        %v503 = vsel %vm499, 1, 0
        %v504 = vsel %vm500, 1, 0
        %v505 = vcvt.s32.f32 %v501
        %v506 = vcvt.s32.f32 %v502
        %v507 = vcvt.s32.f32 %v503
        %v508 = vcvt.s32.f32 %v504
        %v509 = vpack.c.bf16 %v506, %v505
        %v510 = vpack.c.bf16 %v508, %v507
        %vm511 = vcmask 130048
        %512 = vst.msk [vmem:[#allocation5] sm:$0xff] %vm511, %v509
        %513 = vst.msk [vmem:[#allocation5 + $0x8] sm:$0xff] %vm511, %v510
        %v514 = vlaneseq
        %v515 = vshrl.u32 %v514, 7
        %v516 = vadd.s32 %v515, 8
        %v517 = vld [vmem:[%s1] sm:$0x1]
        %v518 = vlaneseq
        %v519 = vshrl.u32 %v518, 7
        %v520 = vsub.s32 0, %v519
        %v521 = vrot.slane %v517, %v520
        %vm522 = vcmp.eq.s32.totalorder %v515, %v521
        %vm523 = vcmp.eq.s32.totalorder %v516, %v521
        %v524 = vsel %vm522, 1, 0
        %v525 = vsel %vm523, 1, 0
        %v526 = vcvt.s32.f32 %v524
        %v527 = vcvt.s32.f32 %v525
        %v528 = vpack.c.bf16 %v527, %v526
        %vm529 = vcmask 261120
        %530 = vst.msk [vmem:[#allocation6] sm:$0xff] %vm529, %v528
        %v531 = vld [vmem:[%s2] sm:$0x1]
        %v532 = vlaneseq
        %v533 = vshrl.u32 %v532, 7
        %v534 = vsub.s32 0, %v533
        %v535 = vrot.slane %v531, %v534
        %vm536 = vcmp.eq.s32.totalorder %v535, %v515
        %v537 = vsel %vm536, 1, 0
        %v538 = vcvt.s32.f32 %v537
        %v539 = vpack.c.bf16 %v538, %v538
        %vm540 = vcmask 122880
        %541 = vst.msk [vmem:[#allocation7] sm:$0x1] %vm540, %v539
        %v542 = vld [vmem:[%s3] sm:$0xff]
        %v543 = vld [vmem:[%s3 + $0x8] sm:$0xff]
        %544 = vset.pattern.permute.xlu0 0
        %545 = vperm.xlu0 %544, %v542
        %v546 = vpop.permute.xlu0 %545
        %547 = vset.pattern.permute.xlu0 0
        %548 = vperm.xlu0 %547, %v543
        %v549 = vpop.permute.xlu0 %548
        %vm550 = vcmp.eq.s32.totalorder %v546, %v484
        %vm551 = vcmp.eq.s32.totalorder %v549, %v484
        %v552 = vsel %vm550, 1, 0
        %v553 = vsel %vm551, 1, 0
        %v554 = vcvt.s32.f32 %v552
        %v555 = vcvt.s32.f32 %v553
        %v556 = vpack.c.bf16 %v555, %v554
        %vm557 = vcmask 15360
        %558 = vst.msk [vmem:[#allocation8] sm:$0xff] %vm557, %v556
      $region68: #{deeper_gcn_forward.1} parent=63 // pred_fallthru
        _
      %p559 = scmp.gt.s32.totalorder %s22, 0
      // Predicated region
      $region69: #{deeper_gcn_forward.1} parent=63 // pred_check
        %p560 = pneg %p559
      $region70: #{deeper_gcn_forward.1} parent=63 // pred_check_branch
        %562 = sbr.rel (%p560) target = $region72
      $region71: #{deeper_gcn_forward.1} parent=63 // pred_region
        %v563 = vld [vmem:[%s455 + $0x1] sm:$0x1]
        %v564 = vld [vmem:[%s455 + $0x2] sm:$0x1]
        %v565 = vld [vmem:[#allocation2] sm:$0xff]
        %v566 = vld [vmem:[#allocation2 + $0x8] sm:$0xff]
        %567 = vadd.xlane.f32.xlu0 %v565
        %v568 = vpop.xlane.xlu0 %567
        %569 = vadd.xlane.f32.xlu0 %v566
        %v570 = vpop.xlane.xlu0 %569
        %v571 = vrcp.pop 128.0
        %v572 = vmul.f32 %v568, %v571
        %v573 = vmul.f32 %v570, %v571
        %v574 = vsub.f32 %v565, %v572
        %v575 = vsub.f32 %v566, %v573
        %v576 = vmul.f32 %v574, %v574
        %v577 = vmul.f32 %v575, %v575
        %578 = vadd.xlane.f32.xlu0 %v576
        %v579 = vpop.xlane.xlu0 %578
        %580 = vadd.xlane.f32.xlu0 %v577
        %v581 = vpop.xlane.xlu0 %580
        %v582 = vmul.f32 %v579, %v571
        %v583 = vmul.f32 %v581, %v571
        %v584 = vadd.f32 %v582, 1e-05
        %v585 = vadd.f32 %v583, 1e-05
        %v586 = vrsqrt.pop %v584
        %v587 = vrsqrt.pop %v585
        %v588 = vmul.f32 %v574, %v586
        %v589 = vmul.f32 %v575, %v587
        %v590 = vlaneseq
        %v591 = vshrl.u32 %v590, 7
        %v592 = vsub.s32 0, %v591
        %v593 = vrot.slane %v563, %v592
        %v594 = vmul.f32 %v588, %v593
        %v595 = vmul.f32 %v589, %v593
        %v596 = vlaneseq
        %v597 = vshrl.u32 %v596, 7
        %v598 = vsub.s32 0, %v597
        %v599 = vrot.slane %v564, %v598
        %v600 = vadd.f32 %v594, %v599
        %v601 = vadd.f32 %v595, %v599
        %v602 = vmax.f32 %v600, 0.0
        %v603 = vmax.f32 %v601, 0.0
        %v604 = vld [vmem:[#allocation7] sm:$0x1]
        %v605 = vpack.c.bf16 %v603, %v602
        %v606 = vld [vmem:[#allocation3] sm:$0x3]
        %vm607 = vcmask 130048
        %v609 = vsel %vm607, %v604, 0
        %611 = vmatprep.subr.bf16.mxu0 0
        %612 = vmatpush1.bf16.msra.mxu0 %v605
        %613 = vmatprep.subr.bf16.mxu0 0
        %614 = vmatpush1.bf16.msra.mxu0 0
        %615 = vmatprep.subr.bf16.mxu0 0
        %616 = vmatpush1.bf16.msra.mxu0 0
        %617 = vmatprep.subr.bf16.mxu0 0
        %618 = vmatpush1.bf16.msra.mxu0 0
        %619 = vmatprep.subr.bf16.mxu0 0
        %620 = vmatpush1.bf16.msra.mxu0 0
        %621 = vmatprep.subr.bf16.mxu0 0
        %622 = vmatpush1.bf16.msra.mxu0 0
        %623 = vmatprep.subr.bf16.mxu0 0
        %624 = vmatpush1.bf16.msra.mxu0 0
        %625 = vmatprep.subr.bf16.mxu0 0
        %626 = vmatpush1.bf16.msra.mxu0 0
        %627 = vmatprep.subr.bf16.mxu0 0
        %628 = vmatpush1.bf16.msra.mxu0 0
        %629 = vmatprep.subr.bf16.mxu0 0
        %630 = vmatpush1.bf16.msra.mxu0 0
        %631 = vmatprep.subr.bf16.mxu0 0
        %632 = vmatpush1.bf16.msra.mxu0 0
        %633 = vmatprep.subr.bf16.mxu0 0
        %634 = vmatpush1.bf16.msra.mxu0 0
        %635 = vmatprep.subr.bf16.mxu0 0
        %636 = vmatpush1.bf16.msra.mxu0 0
        %637 = vmatprep.subr.bf16.mxu0 0
        %638 = vmatpush1.bf16.msra.mxu0 0
        %639 = vmatprep.subr.bf16.mxu0 0
        %640 = vmatpush1.bf16.msra.mxu0 0
        %641 = vmatprep.subr.bf16.mxu0 0
        %642 = vmatpush1.bf16.msra.mxu0 0
        %643 = vmatprep.mubr.bf16.mxu0 0
        %644 = vmatmul.mubr.bf16.gmra.mrb[0].mxu0 %v609
        %v645 = vpop.f32.mrb[0].mxu0
        %v646 = vadd.f32 %v606, %v645
        %v647 = vpop.f32.mrb[0].mxu0
        %v648 = vpop.f32.mrb[0].mxu0
        %v649 = vpop.f32.mrb[0].mxu0
        %650 = vdwg.mxu0
        %v651 = vpack.c.bf16 %v646, %v646
        %v652 = vld [vmem:[%s463] sm:$0xf]
        %v653 = vld [vmem:[%s463 + $0x4] sm:$0xf]
        %v654 = vld [vmem:[%s463 + $0x8] sm:$0xf]
        %v655 = vld [vmem:[%s463 + $0xc] sm:$0xf]
        %v656 = vld [vmem:[%s463 + $0x10] sm:$0xf]
        %v657 = vld [vmem:[%s463 + $0x14] sm:$0xf]
        %v658 = vld [vmem:[%s463 + $0x18] sm:$0xf]
        %v659 = vld [vmem:[%s463 + $0x1c] sm:$0xf]
        %v660 = vld [vmem:[%s463 + $0x20] sm:$0xf]
        %v661 = vld [vmem:[%s463 + $0x24] sm:$0xf]
        %v662 = vld [vmem:[%s463 + $0x28] sm:$0xf]
        %v663 = vld [vmem:[%s463 + $0x2c] sm:$0xf]
        %v664 = vld [vmem:[%s463 + $0x30] sm:$0xf]
        %v665 = vld [vmem:[%s463 + $0x34] sm:$0xf]
        %v666 = vld [vmem:[%s463 + $0x38] sm:$0xf]
        %v667 = vld [vmem:[%s463 + $0x3c] sm:$0xf]
        %v668 = vld [vmem:[%s455 + $0x3] sm:$0x1]
        %v669 = vlaneseq
        %v670 = vshrl.u32 %v669, 7
        %v671 = vsub.s32 0, %v670
        %v672 = vrot.slane %v668, %v671
        %v689 = vunpack.c.l.b16 %v652
        %v690 = vunpack.c.l.b16 %v653
        %v691 = vunpack.c.l.b16 %v654
        %v692 = vunpack.c.l.b16 %v655
        %v693 = vunpack.c.l.b16 %v656
        %v694 = vunpack.c.l.b16 %v657
        %v695 = vunpack.c.l.b16 %v658
        %v696 = vunpack.c.l.b16 %v659
        %v697 = vunpack.c.l.b16 %v660
        %v698 = vunpack.c.l.b16 %v661
        %v699 = vunpack.c.l.b16 %v662
        %v700 = vunpack.c.l.b16 %v663
        %v701 = vunpack.c.l.b16 %v664
        %v702 = vunpack.c.l.b16 %v665
        %v703 = vunpack.c.l.b16 %v666
        %v704 = vunpack.c.l.b16 %v667
        %v705 = vpack.c.b16 %v690, %v689
        %v706 = vpack.c.b16 %v692, %v691
        %v707 = vpack.c.b16 %v694, %v693
        %v708 = vpack.c.b16 %v696, %v695
        %v709 = vpack.c.b16 %v698, %v697
        %v710 = vpack.c.b16 %v700, %v699
        %v711 = vpack.c.b16 %v702, %v701
        %v712 = vpack.c.b16 %v704, %v703
        %721 = vmatprep.subr.bf16.mxu0 0
        %722 = vmatpush1.bf16.msra.mxu0 %v705
        %723 = vmatprep.subr.bf16.mxu0 0
        %724 = vmatpush1.bf16.msra.mxu0 %v706
        %725 = vmatprep.subr.bf16.mxu0 0
        %726 = vmatpush1.bf16.msra.mxu0 %v707
        %727 = vmatprep.subr.bf16.mxu0 0
        %728 = vmatpush1.bf16.msra.mxu0 %v708
        %729 = vmatprep.subr.bf16.mxu0 0
        %730 = vmatpush1.bf16.msra.mxu0 %v709
        %731 = vmatprep.subr.bf16.mxu0 0
        %732 = vmatpush1.bf16.msra.mxu0 %v710
        %733 = vmatprep.subr.bf16.mxu0 0
        %734 = vmatpush1.bf16.msra.mxu0 %v711
        %735 = vmatprep.subr.bf16.mxu0 0
        %736 = vmatpush1.bf16.msra.mxu0 %v712
        %737 = vmatprep.subr.bf16.mxu0 0
        %738 = vmatpush1.bf16.msra.mxu0 0
        %739 = vmatprep.subr.bf16.mxu0 0
        %740 = vmatpush1.bf16.msra.mxu0 0
        %741 = vmatprep.subr.bf16.mxu0 0
        %742 = vmatpush1.bf16.msra.mxu0 0
        %743 = vmatprep.subr.bf16.mxu0 0
        %744 = vmatpush1.bf16.msra.mxu0 0
        %745 = vmatprep.subr.bf16.mxu0 0
        %746 = vmatpush1.bf16.msra.mxu0 0
        %747 = vmatprep.subr.bf16.mxu0 0
        %748 = vmatpush1.bf16.msra.mxu0 0
        %749 = vmatprep.subr.bf16.mxu0 0
        %750 = vmatpush1.bf16.msra.mxu0 0
        %751 = vmatprep.subr.bf16.mxu0 0
        %752 = vmatpush1.bf16.msra.mxu0 0
        %753 = vmatprep.mubr.bf16.mxu0 0
        %754 = vmatmul.mubr.bf16.gmra.mrb[0].mxu0 %v651
        %v755 = vpop.f32.mrb[0].mxu0
        %v756 = vadd.f32 %v672, %v755
        %v757 = vpop.f32.mrb[0].mxu0
        %v758 = vpop.f32.mrb[0].mxu0
        %v759 = vpop.f32.mrb[0].mxu0
        %760 = vdwg.mxu0
        %v761 = vld [vmem:[%s455 + $0x4] sm:$0x1]
        %v762 = vld [vmem:[%s455 + $0x5] sm:$0x1]
        %vm763 = vcmask 1041408
        %v764 = vsel %vm763, %v756, 0.0
        %765 = vadd.xlane.f32.xlu0 %v764
        %v766 = vpop.xlane.xlu0 %765
        %v767 = vmul.f32 %v766, %v571
        %v768 = vsub.f32 %v756, %v767
        %v769 = vmul.f32 %v768, %v768
        %v770 = vsel %vm763, %v769, 0.0
        %771 = vadd.xlane.f32.xlu0 %v770
        %v772 = vpop.xlane.xlu0 %771
        %v773 = vmul.f32 %v772, %v571
        %v774 = vadd.f32 %v773, 1e-05
        %v775 = vrsqrt.pop %v774
        %v776 = vmul.f32 %v768, %v775
        %v777 = vlaneseq
        %v778 = vshrl.u32 %v777, 7
        %v779 = vsub.s32 0, %v778
        %v780 = vrot.slane %v761, %v779
        %v781 = vmul.f32 %v776, %v780
        %v782 = vlaneseq
        %v783 = vshrl.u32 %v782, 7
        %v784 = vsub.s32 0, %v783
        %v785 = vrot.slane %v762, %v784
        %v786 = vadd.f32 %v781, %v785
        %v787 = vmax.f32 %v786, 0.0
        %v788 = vpack.c.bf16 %v787, %v787
        %s789 = scalar_lea.vmem %s463, 64
        %v790 = vld [vmem:[%s789] sm:$0xf]
        %v791 = vld [vmem:[%s789 + $0x4] sm:$0xf]
        %v792 = vld [vmem:[%s789 + $0x8] sm:$0xf]
        %v793 = vld [vmem:[%s789 + $0xc] sm:$0xf]
        %v794 = vld [vmem:[%s789 + $0x10] sm:$0xf]
        %v795 = vld [vmem:[%s789 + $0x14] sm:$0xf]
        %v796 = vld [vmem:[%s789 + $0x18] sm:$0xf]
        %v797 = vld [vmem:[%s789 + $0x1c] sm:$0xf]
        %v798 = vld [vmem:[%s789 + $0x20] sm:$0xf]
        %v799 = vld [vmem:[%s789 + $0x24] sm:$0xf]
        %v800 = vld [vmem:[%s789 + $0x28] sm:$0xf]
        %v801 = vld [vmem:[%s789 + $0x2c] sm:$0xf]
        %v802 = vld [vmem:[%s789 + $0x30] sm:$0xf]
        %v803 = vld [vmem:[%s789 + $0x34] sm:$0xf]
        %v804 = vld [vmem:[%s789 + $0x38] sm:$0xf]
        %v805 = vld [vmem:[%s789 + $0x3c] sm:$0xf]
        %v806 = vld [vmem:[%s455 + $0x6] sm:$0x1]
        %v807 = vlaneseq
        %v808 = vshrl.u32 %v807, 7
        %v809 = vsub.s32 0, %v808
        %v810 = vrot.slane %v806, %v809
        %v827 = vunpack.c.l.b16 %v790
        %v828 = vunpack.c.l.b16 %v791
        %v829 = vunpack.c.l.b16 %v792
        %v830 = vunpack.c.l.b16 %v793
        %v831 = vunpack.c.l.b16 %v794
        %v832 = vunpack.c.l.b16 %v795
        %v833 = vunpack.c.l.b16 %v796
        %v834 = vunpack.c.l.b16 %v797
        %v835 = vunpack.c.l.b16 %v798
        %v836 = vunpack.c.l.b16 %v799
        %v837 = vunpack.c.l.b16 %v800
        %v838 = vunpack.c.l.b16 %v801
        %v839 = vunpack.c.l.b16 %v802
        %v840 = vunpack.c.l.b16 %v803
        %v841 = vunpack.c.l.b16 %v804
        %v842 = vunpack.c.l.b16 %v805
        %v843 = vpack.c.b16 %v828, %v827
        %v844 = vpack.c.b16 %v830, %v829
        %v845 = vpack.c.b16 %v832, %v831
        %v846 = vpack.c.b16 %v834, %v833
        %v847 = vpack.c.b16 %v836, %v835
        %v848 = vpack.c.b16 %v838, %v837
        %v849 = vpack.c.b16 %v840, %v839
        %v850 = vpack.c.b16 %v842, %v841
        %859 = vmatprep.subr.bf16.mxu0 0
        %860 = vmatpush1.bf16.msra.mxu0 %v843
        %861 = vmatprep.subr.bf16.mxu0 0
        %862 = vmatpush1.bf16.msra.mxu0 %v844
        %863 = vmatprep.subr.bf16.mxu0 0
        %864 = vmatpush1.bf16.msra.mxu0 %v845
        %865 = vmatprep.subr.bf16.mxu0 0
        %866 = vmatpush1.bf16.msra.mxu0 %v846
        %867 = vmatprep.subr.bf16.mxu0 0
        %868 = vmatpush1.bf16.msra.mxu0 %v847
        %869 = vmatprep.subr.bf16.mxu0 0
        %870 = vmatpush1.bf16.msra.mxu0 %v848
        %871 = vmatprep.subr.bf16.mxu0 0
        %872 = vmatpush1.bf16.msra.mxu0 %v849
        %873 = vmatprep.subr.bf16.mxu0 0
        %874 = vmatpush1.bf16.msra.mxu0 %v850
        %875 = vmatprep.subr.bf16.mxu0 0
        %876 = vmatpush1.bf16.msra.mxu0 0
        %877 = vmatprep.subr.bf16.mxu0 0
        %878 = vmatpush1.bf16.msra.mxu0 0
        %879 = vmatprep.subr.bf16.mxu0 0
        %880 = vmatpush1.bf16.msra.mxu0 0
        %881 = vmatprep.subr.bf16.mxu0 0
        %882 = vmatpush1.bf16.msra.mxu0 0
        %883 = vmatprep.subr.bf16.mxu0 0
        %884 = vmatpush1.bf16.msra.mxu0 0
        %885 = vmatprep.subr.bf16.mxu0 0
        %886 = vmatpush1.bf16.msra.mxu0 0
        %887 = vmatprep.subr.bf16.mxu0 0
        %888 = vmatpush1.bf16.msra.mxu0 0
        %889 = vmatprep.subr.bf16.mxu0 0
        %890 = vmatpush1.bf16.msra.mxu0 0
        %891 = vmatprep.mubr.bf16.mxu0 0
        %892 = vmatmul.mubr.bf16.gmra.mrb[0].mxu0 %v788
        %v893 = vpop.f32.mrb[0].mxu0
        %v894 = vadd.f32 %v810, %v893
        %v895 = vpop.f32.mrb[0].mxu0
        %v896 = vpop.f32.mrb[0].mxu0
        %v897 = vpop.f32.mrb[0].mxu0
        %898 = vdwg.mxu0
        %v899 = vld [vmem:[%s455 + $0x7] sm:$0x1]
        %v900 = vld [vmem:[%s455 + $0x8] sm:$0x1]
        %v901 = vsel %vm763, %v894, 0.0
        %902 = vadd.xlane.f32.xlu0 %v901
        %v903 = vpop.xlane.xlu0 %902
        %v904 = vmul.f32 %v903, %v571
        %v905 = vsub.f32 %v894, %v904
        %v906 = vmul.f32 %v905, %v905
        %v907 = vsel %vm763, %v906, 0.0
        %908 = vadd.xlane.f32.xlu0 %v907
        %v909 = vpop.xlane.xlu0 %908
        %v910 = vmul.f32 %v909, %v571
        %v911 = vadd.f32 %v910, 1e-05
        %v912 = vrsqrt.pop %v911
        %v913 = vmul.f32 %v905, %v912
        %v914 = vlaneseq
        %v915 = vshrl.u32 %v914, 7
        %v916 = vsub.s32 0, %v915
        %v917 = vrot.slane %v899, %v916
        %v918 = vmul.f32 %v913, %v917
        %v919 = vlaneseq
        %v920 = vshrl.u32 %v919, 7
        %v921 = vsub.s32 0, %v920
        %v922 = vrot.slane %v900, %v921
        %v923 = vadd.f32 %v918, %v922
        %v924 = vmax.f32 %v923, 0.0
        %925 = vst [vmem:[#allocation3] sm:$0x3] %v924
        %v926 = vld [vmem:[#allocation8] sm:$0xff]
        %v927 = vpack.c.bf16 %v924, %v924
        %vm928 = vcmask 15360
        %v930 = vsel %vm928, %v926, 0
        %vm932 = vcmask 1040384
        %v934 = vsel %vm932, %v927, 0
        %936 = vmatprep.subr.bf16.mxu0 0
        %937 = vmatpush1.bf16.msra.mxu0 %v934
        %938 = vmatprep.subr.bf16.mxu0 0
        %939 = vmatpush1.bf16.msra.mxu0 0
        %940 = vmatprep.subr.bf16.mxu0 0
        %941 = vmatpush1.bf16.msra.mxu0 0
        %942 = vmatprep.subr.bf16.mxu0 0
        %943 = vmatpush1.bf16.msra.mxu0 0
        %944 = vmatprep.subr.bf16.mxu0 0
        %945 = vmatpush1.bf16.msra.mxu0 0
        %946 = vmatprep.subr.bf16.mxu0 0
        %947 = vmatpush1.bf16.msra.mxu0 0
        %948 = vmatprep.subr.bf16.mxu0 0
        %949 = vmatpush1.bf16.msra.mxu0 0
        %950 = vmatprep.subr.bf16.mxu0 0
        %951 = vmatpush1.bf16.msra.mxu0 0
        %952 = vmatprep.subr.bf16.mxu0 0
        %953 = vmatpush1.bf16.msra.mxu0 0
        %954 = vmatprep.subr.bf16.mxu0 0
        %955 = vmatpush1.bf16.msra.mxu0 0
        %956 = vmatprep.subr.bf16.mxu0 0
        %957 = vmatpush1.bf16.msra.mxu0 0
        %958 = vmatprep.subr.bf16.mxu0 0
        %959 = vmatpush1.bf16.msra.mxu0 0
        %960 = vmatprep.subr.bf16.mxu0 0
        %961 = vmatpush1.bf16.msra.mxu0 0
        %962 = vmatprep.subr.bf16.mxu0 0
        %963 = vmatpush1.bf16.msra.mxu0 0
        %964 = vmatprep.subr.bf16.mxu0 0
        %965 = vmatpush1.bf16.msra.mxu0 0
        %966 = vmatprep.subr.bf16.mxu0 0
        %967 = vmatpush1.bf16.msra.mxu0 0
        %968 = vmatprep.mubr.bf16.mxu0 0
        %969 = vmatmul.mubr.bf16.gmra.mrb[0].mxu0 %v930
        %v970 = vpop.f32.mrb[0].mxu0
        %v971 = vadd.f32 0.0, %v970
        %v972 = vpop.f32.mrb[0].mxu0
        %v973 = vpop.f32.mrb[0].mxu0
        %v974 = vadd.f32 0.0, %v973
        %v975 = vpop.f32.mrb[0].mxu0
        %976 = vdwg.mxu0
        %v977 = vadd.f32 %v602, %v971
        %v978 = vadd.f32 %v603, %v974
        %979 = vst [vmem:[#allocation4] sm:$0xff] %v977
        %980 = vst [vmem:[#allocation4 + $0x8] sm:$0xff] %v978
      $region72: #{deeper_gcn_forward.1} parent=63 // pred_fallthru
        _
      %v981 = vld [vmem:[#allocation4] sm:$0xff]
      %v982 = vld [vmem:[#allocation4 + $0x8] sm:$0xff]
      %v983 = vld [vmem:[#allocation5] sm:$0xff]
      %v984 = vld [vmem:[#allocation5 + $0x8] sm:$0xff]
      %v985 = vpack.c.bf16 %v982, %v981
      %v986 = vld [vmem:[%s5] sm:$0xff]
      %v987 = vld [vmem:[%s5 + $0x8] sm:$0xff]
      %v988 = vld [vmem:[%s5 + $0x10] sm:$0xff]
      %v989 = vld [vmem:[%s5 + $0x18] sm:$0xff]
      %vm990 = vcmask 130048
      %v992 = vsel %vm990, %v983, 0
      %v995 = vsel %vm990, %v984, 0
      %997 = vmatprep.subr.bf16.mxu0 0
      %998 = vmatpush1.bf16.msra.mxu0 %v985
      %999 = vmatprep.subr.bf16.mxu0 0
      %1000 = vmatpush1.bf16.msra.mxu0 0
      %1001 = vmatprep.subr.bf16.mxu0 0
      %1002 = vmatpush1.bf16.msra.mxu0 0
      %1003 = vmatprep.subr.bf16.mxu0 0
      %1004 = vmatpush1.bf16.msra.mxu0 0
      %1005 = vmatprep.subr.bf16.mxu0 0
      %1006 = vmatpush1.bf16.msra.mxu0 0
      %1007 = vmatprep.subr.bf16.mxu0 0
      %1008 = vmatpush1.bf16.msra.mxu0 0
      %1009 = vmatprep.subr.bf16.mxu0 0
      %1010 = vmatpush1.bf16.msra.mxu0 0
      %1011 = vmatprep.subr.bf16.mxu0 0
      %1012 = vmatpush1.bf16.msra.mxu0 0
      %1013 = vmatprep.subr.bf16.mxu0 0
      %1014 = vmatpush1.bf16.msra.mxu0 0
      %1015 = vmatprep.subr.bf16.mxu0 0
      %1016 = vmatpush1.bf16.msra.mxu0 0
      %1017 = vmatprep.subr.bf16.mxu0 0
      %1018 = vmatpush1.bf16.msra.mxu0 0
      %1019 = vmatprep.subr.bf16.mxu0 0
      %1020 = vmatpush1.bf16.msra.mxu0 0
      %1021 = vmatprep.subr.bf16.mxu0 0
      %1022 = vmatpush1.bf16.msra.mxu0 0
      %1023 = vmatprep.subr.bf16.mxu0 0
      %1024 = vmatpush1.bf16.msra.mxu0 0
      %1025 = vmatprep.subr.bf16.mxu0 0
      %1026 = vmatpush1.bf16.msra.mxu0 0
      %1027 = vmatprep.subr.bf16.mxu0 0
      %1028 = vmatpush1.bf16.msra.mxu0 0
      %1029 = vmatprep.mubr.bf16.mxu0 0
      %1030 = vmatmul.mubr.bf16.gmra.mrb[0].mxu0 %v992
      %v1031 = vpop.f32.mrb[0].mxu0
      %v1032 = vadd.f32 %v986, %v1031
      %v1033 = vpop.f32.mrb[0].mxu0
      %v1034 = vpop.f32.mrb[0].mxu0
      %v1035 = vadd.f32 %v987, %v1034
      %v1036 = vpop.f32.mrb[0].mxu0
      %1037 = vmatprep.mubr.bf16.mxu0 0
      %1038 = vmatmul.mubr.bf16.gmra.mrb[0].mxu0 %v995
      %v1039 = vpop.f32.mrb[0].mxu0
      %v1040 = vadd.f32 %v988, %v1039
      %v1041 = vpop.f32.mrb[0].mxu0
      %v1042 = vpop.f32.mrb[0].mxu0
      %v1043 = vadd.f32 %v989, %v1042
      %v1044 = vpop.f32.mrb[0].mxu0
      %1045 = vdwg.mxu0
      %v1046 = vmax.f32 %v1032, 0.0
      %v1047 = vmax.f32 %v1035, 0.0
      %v1048 = vmax.f32 %v1040, 0.0
      %v1049 = vmax.f32 %v1043, 0.0
      %v1050 = vadd.f32 %v1046, 1e-07
      %v1051 = vadd.f32 %v1047, 1e-07
      %v1052 = vadd.f32 %v1048, 1e-07
      %v1053 = vadd.f32 %v1049, 1e-07
      %v1054 = vld [vmem:[#allocation6] sm:$0xff]
      %v1055 = vpack.c.bf16 %v1051, %v1050
      %v1056 = vpack.c.bf16 %v1053, %v1052
      %vm1057 = vcmask 261120
      %v1059 = vsel %vm1057, %v1054, 0
      %1061 = vmatprep.subr.bf16.mxu0 0
      %1062 = vmatpush1.bf16.msra.mxu0 %v1055
      %1063 = vmatprep.subr.bf16.mxu0 0
      %1064 = vmatpush1.bf16.msra.mxu0 %v1056
      %1065 = vmatprep.subr.bf16.mxu0 0
      %1066 = vmatpush1.bf16.msra.mxu0 0
      %1067 = vmatprep.subr.bf16.mxu0 0
      %1068 = vmatpush1.bf16.msra.mxu0 0
      %1069 = vmatprep.subr.bf16.mxu0 0
      %1070 = vmatpush1.bf16.msra.mxu0 0
      %1071 = vmatprep.subr.bf16.mxu0 0
      %1072 = vmatpush1.bf16.msra.mxu0 0
      %1073 = vmatprep.subr.bf16.mxu0 0
      %1074 = vmatpush1.bf16.msra.mxu0 0
      %1075 = vmatprep.subr.bf16.mxu0 0
      %1076 = vmatpush1.bf16.msra.mxu0 0
      %1077 = vmatprep.subr.bf16.mxu0 0
      %1078 = vmatpush1.bf16.msra.mxu0 0
      %1079 = vmatprep.subr.bf16.mxu0 0
      %1080 = vmatpush1.bf16.msra.mxu0 0
      %1081 = vmatprep.subr.bf16.mxu0 0
      %1082 = vmatpush1.bf16.msra.mxu0 0
      %1083 = vmatprep.subr.bf16.mxu0 0
      %1084 = vmatpush1.bf16.msra.mxu0 0
      %1085 = vmatprep.subr.bf16.mxu0 0
      %1086 = vmatpush1.bf16.msra.mxu0 0
      %1087 = vmatprep.subr.bf16.mxu0 0
      %1088 = vmatpush1.bf16.msra.mxu0 0
      %1089 = vmatprep.subr.bf16.mxu0 0
      %1090 = vmatpush1.bf16.msra.mxu0 0
      %1091 = vmatprep.subr.bf16.mxu0 0
      %1092 = vmatpush1.bf16.msra.mxu0 0
      %1093 = vmatprep.mubr.bf16.mxu0 0
      %1094 = vmatmul.mubr.bf16.gmra.mrb[0].mxu0 %v1059
      %v1095 = vpop.f32.mrb[0].mxu0
      %v1096 = vadd.f32 0.0, %v1095
      %v1097 = vpop.f32.mrb[0].mxu0
      %v1098 = vpop.f32.mrb[0].mxu0
      %v1099 = vadd.f32 0.0, %v1098
      %v1100 = vpop.f32.mrb[0].mxu0
      %1101 = vdwg.mxu0
      %v1102 = vadd.f32 %v981, %v1096
      %v1103 = vadd.f32 %v982, %v1099
      %v1104 = vpack.c.bf16 %v1103, %v1102
      %v1105 = vld [vmem:[%s442] sm:$0xf]
      %v1106 = vld [vmem:[%s442 + $0x4] sm:$0xf]
      %v1107 = vld [vmem:[%s442 + $0x8] sm:$0xf]
      %v1108 = vld [vmem:[%s442 + $0xc] sm:$0xf]
      %v1109 = vld [vmem:[%s442 + $0x10] sm:$0xf]
      %v1110 = vld [vmem:[%s442 + $0x14] sm:$0xf]
      %v1111 = vld [vmem:[%s442 + $0x18] sm:$0xf]
      %v1112 = vld [vmem:[%s442 + $0x1c] sm:$0xf]
      %v1113 = vld [vmem:[%s442 + $0x20] sm:$0xf]
      %v1114 = vld [vmem:[%s442 + $0x24] sm:$0xf]
      %v1115 = vld [vmem:[%s442 + $0x28] sm:$0xf]
      %v1116 = vld [vmem:[%s442 + $0x2c] sm:$0xf]
      %v1117 = vld [vmem:[%s442 + $0x30] sm:$0xf]
      %v1118 = vld [vmem:[%s442 + $0x34] sm:$0xf]
      %v1119 = vld [vmem:[%s442 + $0x38] sm:$0xf]
      %v1120 = vld [vmem:[%s442 + $0x3c] sm:$0xf]
      %v1121 = vld [vmem:[%s455] sm:$0x1]
      %v1122 = vlaneseq
      %v1123 = vshrl.u32 %v1122, 7
      %v1124 = vsub.s32 0, %v1123
      %v1125 = vrot.slane %v1121, %v1124
      %v1142 = vunpack.c.l.b16 %v1105
      %v1143 = vunpack.c.l.b16 %v1106
      %v1144 = vunpack.c.l.b16 %v1107
      %v1145 = vunpack.c.l.b16 %v1108
      %v1146 = vunpack.c.l.b16 %v1109
      %v1147 = vunpack.c.l.b16 %v1110
      %v1148 = vunpack.c.l.b16 %v1111
      %v1149 = vunpack.c.l.b16 %v1112
      %v1150 = vunpack.c.l.b16 %v1113
      %v1151 = vunpack.c.l.b16 %v1114
      %v1152 = vunpack.c.l.b16 %v1115
      %v1153 = vunpack.c.l.b16 %v1116
      %v1154 = vunpack.c.l.b16 %v1117
      %v1155 = vunpack.c.l.b16 %v1118
      %v1156 = vunpack.c.l.b16 %v1119
      %v1157 = vunpack.c.l.b16 %v1120
      %v1158 = vpack.c.b16 %v1143, %v1142
      %v1159 = vpack.c.b16 %v1145, %v1144
      %v1160 = vpack.c.b16 %v1147, %v1146
      %v1161 = vpack.c.b16 %v1149, %v1148
      %v1162 = vpack.c.b16 %v1151, %v1150
      %v1163 = vpack.c.b16 %v1153, %v1152
      %v1164 = vpack.c.b16 %v1155, %v1154
      %v1165 = vpack.c.b16 %v1157, %v1156
      %1174 = vmatprep.subr.bf16.mxu0 0
      %1175 = vmatpush1.bf16.msra.mxu0 %v1158
      %1176 = vmatprep.subr.bf16.mxu0 0
      %1177 = vmatpush1.bf16.msra.mxu0 %v1159
      %1178 = vmatprep.subr.bf16.mxu0 0
      %1179 = vmatpush1.bf16.msra.mxu0 %v1160
      %1180 = vmatprep.subr.bf16.mxu0 0
      %1181 = vmatpush1.bf16.msra.mxu0 %v1161
      %1182 = vmatprep.subr.bf16.mxu0 0
      %1183 = vmatpush1.bf16.msra.mxu0 %v1162
      %1184 = vmatprep.subr.bf16.mxu0 0
      %1185 = vmatpush1.bf16.msra.mxu0 %v1163
      %1186 = vmatprep.subr.bf16.mxu0 0
      %1187 = vmatpush1.bf16.msra.mxu0 %v1164
      %1188 = vmatprep.subr.bf16.mxu0 0
      %1189 = vmatpush1.bf16.msra.mxu0 %v1165
      %1190 = vmatprep.subr.bf16.mxu0 0
      %1191 = vmatpush1.bf16.msra.mxu0 0
      %1192 = vmatprep.subr.bf16.mxu0 0
      %1193 = vmatpush1.bf16.msra.mxu0 0
      %1194 = vmatprep.subr.bf16.mxu0 0
      %1195 = vmatpush1.bf16.msra.mxu0 0
      %1196 = vmatprep.subr.bf16.mxu0 0
      %1197 = vmatpush1.bf16.msra.mxu0 0
      %1198 = vmatprep.subr.bf16.mxu0 0
      %1199 = vmatpush1.bf16.msra.mxu0 0
      %1200 = vmatprep.subr.bf16.mxu0 0
      %1201 = vmatpush1.bf16.msra.mxu0 0
      %1202 = vmatprep.subr.bf16.mxu0 0
      %1203 = vmatpush1.bf16.msra.mxu0 0
      %1204 = vmatprep.subr.bf16.mxu0 0
      %1205 = vmatpush1.bf16.msra.mxu0 0
      %1206 = vmatprep.mubr.bf16.mxu0 0
      %1207 = vmatmul.mubr.bf16.gmra.mrb[0].mxu0 %v1104
      %v1208 = vpop.f32.mrb[0].mxu0
      %v1209 = vadd.f32 %v1125, %v1208
      %v1210 = vpop.f32.mrb[0].mxu0
      %v1211 = vpop.f32.mrb[0].mxu0
      %v1212 = vadd.f32 %v1125, %v1211
      %v1213 = vpop.f32.mrb[0].mxu0
      %1214 = vdwg.mxu0
      %v1215 = vld [vmem:[#allocation2] sm:$0xff]
      %v1216 = vld [vmem:[#allocation2 + $0x8] sm:$0xff]
      %v1217 = vadd.f32 %v1209, %v1215
      %v1218 = vadd.f32 %v1212, %v1216
      %1219 = vst [vmem:[#allocation2] sm:$0xff] %v1217
      %1220 = vst [vmem:[#allocation2 + $0x8] sm:$0xff] %v1218
      %v1221 = vpack.c.bf16 %v1218, %v1217
      %v1222 = vld [vmem:[%s447] sm:$0xf]
      %v1223 = vld [vmem:[%s447 + $0x4] sm:$0xf]
      %v1224 = vld [vmem:[%s447 + $0x8] sm:$0xf]
      %v1225 = vld [vmem:[%s447 + $0xc] sm:$0xf]
      %v1226 = vld [vmem:[%s447 + $0x10] sm:$0xf]
      %v1227 = vld [vmem:[%s447 + $0x14] sm:$0xf]
      %v1228 = vld [vmem:[%s447 + $0x18] sm:$0xf]
      %v1229 = vld [vmem:[%s447 + $0x1c] sm:$0xf]
      %v1230 = vld [vmem:[%s447 + $0x20] sm:$0xf]
      %v1231 = vld [vmem:[%s447 + $0x24] sm:$0xf]
      %v1232 = vld [vmem:[%s447 + $0x28] sm:$0xf]
      %v1233 = vld [vmem:[%s447 + $0x2c] sm:$0xf]
      %v1234 = vld [vmem:[%s447 + $0x30] sm:$0xf]
      %v1235 = vld [vmem:[%s447 + $0x34] sm:$0xf]
      %v1236 = vld [vmem:[%s447 + $0x38] sm:$0xf]
      %v1237 = vld [vmem:[%s447 + $0x3c] sm:$0xf]
      %v1238 = vld [vmem:[%s450] sm:$0x1]
      %v1240 = vlaneseq
      %v1241 = vshrl.u32 %v1240, 7
      %v1242 = vsub.s32 0, %v1241
      %v1243 = vrot.slane %v1238, %v1242
      %v1261 = vunpack.c.l.b16 %v1222
      %v1262 = vunpack.c.l.b16 %v1223
      %v1263 = vunpack.c.l.b16 %v1224
      %v1264 = vunpack.c.l.b16 %v1225
      %v1265 = vunpack.c.l.b16 %v1226
      %v1266 = vunpack.c.l.b16 %v1227
      %v1267 = vunpack.c.l.b16 %v1228
      %v1268 = vunpack.c.l.b16 %v1229
      %v1269 = vunpack.c.l.b16 %v1230
      %v1270 = vunpack.c.l.b16 %v1231
      %v1271 = vunpack.c.l.b16 %v1232
      %v1272 = vunpack.c.l.b16 %v1233
      %v1273 = vunpack.c.l.b16 %v1234
      %v1274 = vunpack.c.l.b16 %v1235
      %v1275 = vunpack.c.l.b16 %v1236
      %v1276 = vunpack.c.l.b16 %v1237
      %v1277 = vpack.c.b16 %v1262, %v1261
      %v1278 = vpack.c.b16 %v1264, %v1263
      %v1279 = vpack.c.b16 %v1266, %v1265
      %v1280 = vpack.c.b16 %v1268, %v1267
      %v1281 = vpack.c.b16 %v1270, %v1269
      %v1282 = vpack.c.b16 %v1272, %v1271
      %v1283 = vpack.c.b16 %v1274, %v1273
      %v1284 = vpack.c.b16 %v1276, %v1275
      %1293 = vmatprep.subr.bf16.mxu0 0
      %1294 = vmatpush1.bf16.msra.mxu0 %v1277
      %1295 = vmatprep.subr.bf16.mxu0 0
      %1296 = vmatpush1.bf16.msra.mxu0 %v1278
      %1297 = vmatprep.subr.bf16.mxu0 0
      %1298 = vmatpush1.bf16.msra.mxu0 %v1279
      %1299 = vmatprep.subr.bf16.mxu0 0
      %1300 = vmatpush1.bf16.msra.mxu0 %v1280
      %1301 = vmatprep.subr.bf16.mxu0 0
      %1302 = vmatpush1.bf16.msra.mxu0 %v1281
      %1303 = vmatprep.subr.bf16.mxu0 0
      %1304 = vmatpush1.bf16.msra.mxu0 %v1282
      %1305 = vmatprep.subr.bf16.mxu0 0
      %1306 = vmatpush1.bf16.msra.mxu0 %v1283
      %1307 = vmatprep.subr.bf16.mxu0 0
      %1308 = vmatpush1.bf16.msra.mxu0 %v1284
      %1309 = vmatprep.subr.bf16.mxu0 0
      %1310 = vmatpush1.bf16.msra.mxu0 0
      %1311 = vmatprep.subr.bf16.mxu0 0
      %1312 = vmatpush1.bf16.msra.mxu0 0
      %1313 = vmatprep.subr.bf16.mxu0 0
      %1314 = vmatpush1.bf16.msra.mxu0 0
      %1315 = vmatprep.subr.bf16.mxu0 0
      %1316 = vmatpush1.bf16.msra.mxu0 0
      %1317 = vmatprep.subr.bf16.mxu0 0
      %1318 = vmatpush1.bf16.msra.mxu0 0
      %1319 = vmatprep.subr.bf16.mxu0 0
      %1320 = vmatpush1.bf16.msra.mxu0 0
      %1321 = vmatprep.subr.bf16.mxu0 0
      %1322 = vmatpush1.bf16.msra.mxu0 0
      %1323 = vmatprep.subr.bf16.mxu0 0
      %1324 = vmatpush1.bf16.msra.mxu0 0
      %1325 = vmatprep.mubr.bf16.mxu0 0
      %1326 = vmatmul.mubr.bf16.gmra.mrb[0].mxu0 %v1221
      %v1327 = vpop.f32.mrb[0].mxu0
      %v1328 = vadd.f32 %v1243, %v1327
      %v1329 = vpop.f32.mrb[0].mxu0
      %v1330 = vpop.f32.mrb[0].mxu0
      %v1331 = vadd.f32 %v1243, %v1330
      %v1332 = vpop.f32.mrb[0].mxu0
      %1333 = vdwg.mxu0
      %s1334 = smul.u32 %s22, 16
      %s1335 = scalar_lea.vmem %s11, %s1334
      %1336 = vst.msk [vmem:[%s1335] sm:$0xff] %vm1057, %v1328
      %1337 = vst.msk [vmem:[%s1335 + $0x8] sm:$0xff] %vm1057, %v1331
      // Predicated region
      $region73: #{deeper_gcn_forward.1} parent=63 // pred_check
        %p1338 = pneg %p297
      $region74: #{deeper_gcn_forward.1} parent=63 // pred_check_branch
        %1340 = sbr.rel (%p1338) target = $region76
      $region75: #{deeper_gcn_forward.1} parent=63 // pred_region
        _
      $region76: #{deeper_gcn_forward.1} parent=63 // pred_fallthru
        _
      // Predicated region
      $region77: #{deeper_gcn_forward.1} parent=63 // pred_check
        %p1341 = pneg %p297
      $region78: #{deeper_gcn_forward.1} parent=63 // pred_check_branch
        %1343 = sbr.rel (%p1341) target = $region80
      $region79: #{deeper_gcn_forward.1} parent=63 // pred_region
        _
      $region80: #{deeper_gcn_forward.1} parent=63 // pred_fallthru
        _
    $region64: #{deeper_gcn_forward.1} parent=5 // pred_fallthru
      _
    %p1344 = scmp.le.s32.totalorder 2, %s17
    // Predicated region
    $region81: #{deeper_gcn_forward.1} parent=5 // pred_check
      %p1345 = pneg %p1344
    $region82: #{deeper_gcn_forward.1} parent=5 // pred_check_branch
      %1347 = sbr.rel (%p1345) target = $region84
    $region83: #{deeper_gcn_forward.1} parent=5 // pred_region
      %s1348 = ssub.s32 %s17, 2
    $region84: #{deeper_gcn_forward.1} parent=5 // pred_fallthru
      _
  $region6: #{deeper_gcn_forward.1} parent=0 // loop_footer
    %s21 = sadd.s32 1, %s17
  $region7: #{deeper_gcn_forward.1} parent=0 // loop_footer_branch
    %16 = sbr.rel target = $region3
  $region8: #{deeper_gcn_forward.1} parent=0 // loop_exit
    _

</llo_original>
